<compile_context>
chip_gen: v7x
topology: tpu7x:2x2x1
jax: 0.10.0
libtpu: 0.0.40
codegen_flags: <defaults>
</compile_context>

<pallas_src>
import jax
import jax.numpy as jnp
from jax import lax
from jax.experimental import pallas as pl
from jax.experimental.pallas import tpu as pltpu

NUM_GROUPS = 8
EPS = 1e-5  # nn.GroupNorm default
LANE = 128


def _round_up(x, m):
    return (x + m - 1) // m * m


def _make_fused_pointnet(B, N, cin0, out_dims, *, gn, cls, pooling):
    """Build a single pallas_call running the full PointNet backbone.

    Grid iterates over batch; each grid step processes one full sample with
    all layers fused (activations stay on-chip between layers).
    """
    L = len(out_dims)
    cpads = [_round_up(c, LANE) for c in out_dims]
    cpad_last = cpads[-1]

    layer_cfgs = []
    for i, cout in enumerate(out_dims):
        layer_cfgs.append(dict(
            cin=(cin0 if i == 0 else cpads[i - 1]),
            cout=cout,
            cpad=cpads[i],
            vpu=(i == 0 and cin0 <= 8),            # tiny-K first layer on VPU
            relu=bool(cls) and (i != L - 1),
        ))

    per_layer_nparams = 6 if gn else 2             # w, b [, gamma, beta, G, Gt]
    n_params = L * per_layer_nparams

    def kernel(*refs):
        x_ref = refs[0]
        param_refs = refs[1:1 + n_params]
        out_refs = refs[1 + n_params:]
        f_ref = out_refs[0]

        h = x_ref[0].astype(jnp.float32)           # (N, Cin0)

        p = 0
        for cfg in layer_cfgs:
            w_ref = param_refs[p]
            b_ref = param_refs[p + 1]
            if gn:
                gamma_ref = param_refs[p + 2]
                beta_ref = param_refs[p + 3]
                G_ref = param_refs[p + 4]
                Gt_ref = param_refs[p + 5]
            p += per_layer_nparams

            bias = b_ref[...]                      # (1, Cpad), padded lanes = 0

            # --- 1x1 conv: matmul with channels on the lane axis (bias NOT
            #     added here when GN is on; it is folded into GN shift below).
            if cfg["vpu"]:
                w = w_ref[...]                     # (Cin0, Cpad) f32
                y = h[:, 0:1] * w[0:1, :]
                for k in range(1, cfg["cin"]):
                    y = y + h[:, k:k + 1] * w[k:k + 1, :]
            else:
                y = jnp.dot(h.astype(jnp.bfloat16), w_ref[...],
                            preferred_element_type=jnp.float32)

            if gn:
                G = G_ref[...]                     # (Cpad, 8)  zero rows for pad
                Gt = Gt_ref[...]                   # (8, Cpad)  zero cols for pad
                gs = cfg["cout"] // NUM_GROUPS
                nf = jnp.float32(N)
                cnt = jnp.float32(N * gs)          # true element count per group
                s1 = jnp.sum(y, axis=0, keepdims=True)        # (1, Cpad)
                s2 = jnp.sum(y * y, axis=0, keepdims=True)    # (1, Cpad)
                # Fold the conv bias into the per-channel sums analytically
                # (saves one (N, Cpad) add per layer).
                S1 = s1 + nf * bias
                S2 = s2 + 2.0 * bias * s1 + nf * bias * bias
                gmean = jnp.dot(S1, G, preferred_element_type=jnp.float32) / cnt
                gmsq = jnp.dot(S2, G, preferred_element_type=jnp.float32) / cnt
                gvar = jnp.maximum(gmsq - gmean * gmean, 0.0)  # clamp cancellation
                inv_std = lax.rsqrt(gvar + EPS)                # (1, 8)
                mean_c = jnp.dot(gmean, Gt, preferred_element_type=jnp.float32)
                istd_c = jnp.dot(inv_std, Gt, preferred_element_type=jnp.float32)
                # Fused affine (bias folded): out = y*scale + shift.
                scale = gamma_ref[...] * istd_c                # (1, Cpad)
                shift = beta_ref[...] + (bias - mean_c) * scale
                y = y * scale + shift
            else:
                y = y + bias

            if cfg["relu"]:
                y = jnp.maximum(y, 0.0)
            h = y                                  # stays on-chip for next layer

        f_ref[0] = h                               # lane-dense (N, Cpad_last) store
        if pooling:
            # Max is per-channel over the points axis, so padded lanes (all
            # zeros) never mix with true channels; wrapper slices them away.
            out_refs[1][0] = jnp.max(h, axis=0, keepdims=True)

    in_specs = [pl.BlockSpec((1, N, cin0), lambda b: (b, 0, 0))]
    for cfg in layer_cfgs:
        in_specs.append(pl.BlockSpec((cfg["cin"], cfg["cpad"]), lambda b: (0, 0)))
        in_specs.append(pl.BlockSpec((1, cfg["cpad"]), lambda b: (0, 0)))
        if gn:
            in_specs.append(pl.BlockSpec((1, cfg["cpad"]), lambda b: (0, 0)))
            in_specs.append(pl.BlockSpec((1, cfg["cpad"]), lambda b: (0, 0)))
            in_specs.append(pl.BlockSpec((cfg["cpad"], NUM_GROUPS), lambda b: (0, 0)))
            in_specs.append(pl.BlockSpec((NUM_GROUPS, cfg["cpad"]), lambda b: (0, 0)))

    if pooling:
        out_shape = (jax.ShapeDtypeStruct((B, N, cpad_last), jnp.float32),
                     jax.ShapeDtypeStruct((B, 1, cpad_last), jnp.float32))
        out_specs = (pl.BlockSpec((1, N, cpad_last), lambda b: (b, 0, 0)),
                     pl.BlockSpec((1, 1, cpad_last), lambda b: (b, 0, 0)))
    else:
        out_shape = jax.ShapeDtypeStruct((B, N, cpad_last), jnp.float32)
        out_specs = pl.BlockSpec((1, N, cpad_last), lambda b: (b, 0, 0))

    return pl.pallas_call(
        kernel,
        out_shape=out_shape,
        grid=(B,),
        in_specs=in_specs,
        out_specs=out_specs,
        compiler_params=pltpu.CompilerParams(
            dimension_semantics=("parallel",),         # batch across TCs (megacore)
            vmem_limit_bytes=64 * 1024 * 1024),        # above scoped default, <= v7x phys
    )


def init_pointnet_params(key, in_dim, out_dims):
    """Deterministic synthetic parameters (Conv1d weights/bias, GroupNorm affine)."""
    params = []
    cin = in_dim
    for cout in out_dims:
        key, k1, k2, k3, k4 = jax.random.split(key, 5)
        w = jax.random.normal(k1, (cout, cin), jnp.float32) * (cin ** -0.5)  # Conv1d weight (Cout, Cin[,1])
        b = 0.01 * jax.random.normal(k2, (cout,), jnp.float32)
        gamma = 1.0 + 0.1 * jax.random.normal(k3, (cout,), jnp.float32)
        beta = 0.1 * jax.random.normal(k4, (cout,), jnp.float32)
        params.append({"w": w, "b": b, "gamma": gamma, "beta": beta})
        cin = cout
    return params


def pointnet_forward(x_bcn, params, out_dims, *, gn=True, cls=True, pooling=True):
    """Matches PointNet.forward: returns f (B, C_out, N) and g = max over points (B, C_out)."""
    B, cin0, N = x_bcn.shape
    h = jnp.transpose(x_bcn, (0, 2, 1)).astype(jnp.float32)   # (B, N, C) channels-last

    cpads = [_round_up(c, LANE) for c in out_dims]
    flat_inputs = [h]
    for i, (cout, p) in enumerate(zip(out_dims, params)):
        cpad = cpads[i]
        cin_pad = cin0 if i == 0 else cpads[i - 1]
        cin_true = p["w"].shape[1]
        vpu_path = (i == 0 and cin0 <= 8)

        # Weight: (Cout, Cin) -> zero-padded, transposed (Cin_pad, Cpad).
        w = jnp.zeros((cin_pad, cpad), jnp.float32)
        w = w.at[:cin_true, :cout].set(jnp.transpose(p["w"]))
        if not vpu_path:
            w = w.astype(jnp.bfloat16)             # bf16 MXU path + halved DMA
        b = jnp.zeros((1, cpad), jnp.float32).at[0, :cout].set(p["b"])
        flat_inputs += [w, b]

        if gn:
            gamma = jnp.zeros((1, cpad), jnp.float32).at[0, :cout].set(p["gamma"])
            beta = jnp.zeros((1, cpad), jnp.float32).at[0, :cout].set(p["beta"])
            gs = cout // NUM_GROUPS
            ch = jnp.arange(cpad)
            G = (((ch[:, None] // gs) == jnp.arange(NUM_GROUPS)[None, :])
                 & (ch[:, None] < cout)).astype(jnp.float32)          # (Cpad, 8)
            Gt = jnp.transpose(G)                                     # (8, Cpad)
            flat_inputs += [gamma, beta, G, Gt]

    layer = _make_fused_pointnet(B, N, cin0, tuple(out_dims),
                                 gn=gn, cls=cls, pooling=pooling)
    outs = layer(*flat_inputs)

    cout_last = out_dims[-1]
    if pooling:
        f_pad, g_pad = outs
        f = jnp.transpose(f_pad[:, :, :cout_last], (0, 2, 1))  # slice pad + back to (B, C, N)
        g = g_pad[:, 0, :cout_last]                            # (B, Cout)
        return f, g
    f_pad = outs
    return jnp.transpose(f_pad[:, :, :cout_last], (0, 2, 1))


def pointnet_reference(x_bcn, params, out_dims, *, gn=True, cls=True, pooling=True):
    """Pure-JAX (f32) reference matching the PyTorch module, for validation."""
    L = len(out_dims)
    h = x_bcn.astype(jnp.float32)                 # (B, C, N)
    for i, (cout, p) in enumerate(zip(out_dims, params)):
        # 1x1 Conv1d
        h = jnp.einsum("oc,bcn->bon", p["w"], h) + p["b"][None, :, None]
        if gn:
            B, C, N = h.shape
            hg = h.reshape(B, NUM_GROUPS, C // NUM_GROUPS, N)
            mean = jnp.mean(hg, axis=(2, 3), keepdims=True)
            var = jnp.mean((hg - mean) ** 2, axis=(2, 3), keepdims=True)
            hg = (hg - mean) / jnp.sqrt(var + EPS)
            h = hg.reshape(B, C, N) * p["gamma"][None, :, None] + p["beta"][None, :, None]
        if cls and i != L - 1:
            h = jnp.maximum(h, 0.0)
    if not pooling:
        return h
    return h, jnp.max(h, axis=2)


if __name__ == "__main__":
    B, N = 2, 16
    in_dim = 4
    out_dims = (32, 64)   # both divisible by 8, as GroupNorm(8, C) requires

    key = jax.random.PRNGKey(0)
    key, kp, kx = jax.random.split(key, 3)
    params = init_pointnet_params(kp, in_dim, out_dims)
    x = jax.random.normal(kx, (B, in_dim, N), jnp.float32)   # PyTorch NCW layout

    f, g = pointnet_forward(x, params, out_dims, gn=True, cls=True, pooling=True)
    f, g = jax.block_until_ready((f, g))

    assert f.shape == (B, out_dims[-1], N), f.shape
    assert g.shape == (B, out_dims[-1]), g.shape
    assert bool(jnp.all(jnp.isfinite(f))) and bool(jnp.all(jnp.isfinite(g)))
    # g must equal max of f over the points dim (sanity of fused pooling).
    assert bool(jnp.allclose(g, jnp.max(f, axis=2), atol=1e-5))

    # Numerical check against a pure-JAX f32 reference (bf16 MXU tolerance).
    f_ref, g_ref = pointnet_reference(x, params, out_dims, gn=True, cls=True, pooling=True)
    assert bool(jnp.allclose(f, f_ref, atol=1e-2, rtol=1e-2)), \
        float(jnp.max(jnp.abs(f - f_ref)))
    assert bool(jnp.allclose(g, g_ref, atol=1e-2, rtol=1e-2)), \
        float(jnp.max(jnp.abs(g - g_ref)))

    print("KERNEL_OK")
</pallas_src>

<mosaic_0001>
module attributes {stable_mosaic.version = 11 : i64} {
  func.func @kernel(%arg0: i32, %arg1: memref<1x16x4xf32, #tpu.memory_space<vmem>>, %arg2: memref<4x128xf32, #tpu.memory_space<vmem>>, %arg3: memref<1x128xf32, #tpu.memory_space<vmem>>, %arg4: memref<1x128xf32, #tpu.memory_space<vmem>>, %arg5: memref<1x128xf32, #tpu.memory_space<vmem>>, %arg6: memref<128x8xf32, #tpu.memory_space<vmem>>, %arg7: memref<8x128xf32, #tpu.memory_space<vmem>>, %arg8: memref<128x128xbf16, #tpu.memory_space<vmem>>, %arg9: memref<1x128xf32, #tpu.memory_space<vmem>>, %arg10: memref<1x128xf32, #tpu.memory_space<vmem>>, %arg11: memref<1x128xf32, #tpu.memory_space<vmem>>, %arg12: memref<128x8xf32, #tpu.memory_space<vmem>>, %arg13: memref<8x128xf32, #tpu.memory_space<vmem>>, %arg14: memref<1x16x128xf32, #tpu.memory_space<vmem>>, %arg15: memref<1x1x128xf32, #tpu.memory_space<vmem>>) attributes {dimension_semantics = [#tpu.dimension_semantics<parallel>], iteration_bounds = array<i64: 2>, scalar_prefetch = 0 : i64, scratch_operands = 0 : i64, tpu.core_type = #tpu.core_type<tc>, window_params = [{transform_indices = @transform_0, window_bounds = array<i64: 1, 16, 4>}, {pipeline_mode = #tpu.pipeline_mode<synchronous>, transform_indices = @transform_1, window_bounds = array<i64: 4, 128>}, {pipeline_mode = #tpu.pipeline_mode<synchronous>, transform_indices = @transform_2, window_bounds = array<i64: 1, 128>}, {pipeline_mode = #tpu.pipeline_mode<synchronous>, transform_indices = @transform_3, window_bounds = array<i64: 1, 128>}, {pipeline_mode = #tpu.pipeline_mode<synchronous>, transform_indices = @transform_4, window_bounds = array<i64: 1, 128>}, {pipeline_mode = #tpu.pipeline_mode<synchronous>, transform_indices = @transform_5, window_bounds = array<i64: 128, 8>}, {pipeline_mode = #tpu.pipeline_mode<synchronous>, transform_indices = @transform_6, window_bounds = array<i64: 8, 128>}, {pipeline_mode = #tpu.pipeline_mode<synchronous>, transform_indices = @transform_7, window_bounds = array<i64: 128, 128>}, {pipeline_mode = #tpu.pipeline_mode<synchronous>, transform_indices = @transform_8, window_bounds = array<i64: 1, 128>}, {pipeline_mode = #tpu.pipeline_mode<synchronous>, transform_indices = @transform_9, window_bounds = array<i64: 1, 128>}, {pipeline_mode = #tpu.pipeline_mode<synchronous>, transform_indices = @transform_10, window_bounds = array<i64: 1, 128>}, {pipeline_mode = #tpu.pipeline_mode<synchronous>, transform_indices = @transform_11, window_bounds = array<i64: 128, 8>}, {pipeline_mode = #tpu.pipeline_mode<synchronous>, transform_indices = @transform_12, window_bounds = array<i64: 8, 128>}, {transform_indices = @transform_13, window_bounds = array<i64: 1, 16, 128>}, {transform_indices = @transform_14, window_bounds = array<i64: 1, 1, 128>}]} {
    %c0 = arith.constant 0 : index
    %c0_0 = arith.constant 0 : index
    %c0_1 = arith.constant 0 : index
    %0 = vector.load %arg1[%c0, %c0_0, %c0_1] : memref<1x16x4xf32, #tpu.memory_space<vmem>>, vector<1x16x4xf32>
    %1 = vector.shape_cast %0 : vector<1x16x4xf32> to vector<16x4xf32>
    %c0_2 = arith.constant 0 : index
    %c0_3 = arith.constant 0 : index
    %2 = vector.load %arg3[%c0_2, %c0_3] : memref<1x128xf32, #tpu.memory_space<vmem>>, vector<1x128xf32>
    %c0_4 = arith.constant 0 : index
    %c0_5 = arith.constant 0 : index
    %3 = vector.load %arg2[%c0_4, %c0_5] : memref<4x128xf32, #tpu.memory_space<vmem>>, vector<4x128xf32>
    %4 = vector.extract_strided_slice %1 {offsets = [0, 0], sizes = [16, 1], strides = [1, 1]} : vector<16x4xf32> to vector<16x1xf32>
    %5 = vector.extract_strided_slice %3 {offsets = [0, 0], sizes = [1, 128], strides = [1, 1]} : vector<4x128xf32> to vector<1x128xf32>
    %6 = vector.broadcast %4 : vector<16x1xf32> to vector<16x128xf32>
    %7 = vector.broadcast %5 : vector<1x128xf32> to vector<16x128xf32>
    %8 = arith.mulf %6, %7 : vector<16x128xf32>
    %9 = vector.extract_strided_slice %1 {offsets = [0, 1], sizes = [16, 1], strides = [1, 1]} : vector<16x4xf32> to vector<16x1xf32>
    %10 = vector.extract_strided_slice %3 {offsets = [1, 0], sizes = [1, 128], strides = [1, 1]} : vector<4x128xf32> to vector<1x128xf32>
    %11 = vector.broadcast %9 : vector<16x1xf32> to vector<16x128xf32>
    %12 = vector.broadcast %10 : vector<1x128xf32> to vector<16x128xf32>
    %13 = arith.mulf %11, %12 : vector<16x128xf32>
    %14 = arith.addf %8, %13 : vector<16x128xf32>
    %15 = vector.extract_strided_slice %1 {offsets = [0, 2], sizes = [16, 1], strides = [1, 1]} : vector<16x4xf32> to vector<16x1xf32>
    %16 = vector.extract_strided_slice %3 {offsets = [2, 0], sizes = [1, 128], strides = [1, 1]} : vector<4x128xf32> to vector<1x128xf32>
    %17 = vector.broadcast %15 : vector<16x1xf32> to vector<16x128xf32>
    %18 = vector.broadcast %16 : vector<1x128xf32> to vector<16x128xf32>
    %19 = arith.mulf %17, %18 : vector<16x128xf32>
    %20 = arith.addf %14, %19 : vector<16x128xf32>
    %21 = vector.extract_strided_slice %1 {offsets = [0, 3], sizes = [16, 1], strides = [1, 1]} : vector<16x4xf32> to vector<16x1xf32>
    %22 = vector.extract_strided_slice %3 {offsets = [3, 0], sizes = [1, 128], strides = [1, 1]} : vector<4x128xf32> to vector<1x128xf32>
    %23 = vector.broadcast %21 : vector<16x1xf32> to vector<16x128xf32>
    %24 = vector.broadcast %22 : vector<1x128xf32> to vector<16x128xf32>
    %25 = arith.mulf %23, %24 : vector<16x128xf32>
    %26 = arith.addf %20, %25 : vector<16x128xf32>
    %c0_6 = arith.constant 0 : index
    %c0_7 = arith.constant 0 : index
    %27 = vector.load %arg6[%c0_6, %c0_7] : memref<128x8xf32, #tpu.memory_space<vmem>>, vector<128x8xf32>
    %c0_8 = arith.constant 0 : index
    %c0_9 = arith.constant 0 : index
    %28 = vector.load %arg7[%c0_8, %c0_9] : memref<8x128xf32, #tpu.memory_space<vmem>>, vector<8x128xf32>
    %cst = arith.constant dense<0.000000e+00> : vector<128xf32>
    %29 = vector.multi_reduction <add>, %26, %cst [0] : vector<16x128xf32> to vector<128xf32>
    %30 = vector.shape_cast %29 : vector<128xf32> to vector<1x128xf32>
    %31 = arith.mulf %26, %26 : vector<16x128xf32>
    %cst_10 = arith.constant dense<0.000000e+00> : vector<128xf32>
    %32 = vector.multi_reduction <add>, %31, %cst_10 [0] : vector<16x128xf32> to vector<128xf32>
    %33 = vector.shape_cast %32 : vector<128xf32> to vector<1x128xf32>
    %cst_11 = arith.constant 1.600000e+01 : f32
    %34 = vector.broadcast %cst_11 : f32 to vector<1x128xf32>
    %35 = arith.mulf %34, %2 : vector<1x128xf32>
    %36 = arith.addf %30, %35 : vector<1x128xf32>
    %cst_12 = arith.constant 2.000000e+00 : f32
    %37 = vector.broadcast %cst_12 : f32 to vector<1x128xf32>
    %38 = arith.mulf %37, %2 : vector<1x128xf32>
    %39 = arith.mulf %38, %30 : vector<1x128xf32>
    %40 = arith.addf %33, %39 : vector<1x128xf32>
    %cst_13 = arith.constant 1.600000e+01 : f32
    %41 = vector.broadcast %cst_13 : f32 to vector<1x128xf32>
    %42 = arith.mulf %41, %2 : vector<1x128xf32>
    %43 = arith.mulf %42, %2 : vector<1x128xf32>
    %44 = arith.addf %40, %43 : vector<1x128xf32>
    %cst_14 = arith.constant dense<0.000000e+00> : vector<1x8xf32>
    %45 = tpu.matmul %36, %27, %cst_14 {dimension_numbers = #tpu.dot_dimension_numbers<[1], [0], [0], [1], [0, 0, 1, 1], [], []>} : vector<1x128xf32>, vector<128x8xf32>, vector<1x8xf32> -> vector<1x8xf32>
    %cst_15 = arith.constant 6.400000e+01 : f32
    %46 = vector.broadcast %cst_15 : f32 to vector<1x8xf32>
    %47 = arith.divf %45, %46 : vector<1x8xf32>
    %cst_16 = arith.constant dense<0.000000e+00> : vector<1x8xf32>
    %48 = tpu.matmul %44, %27, %cst_16 {dimension_numbers = #tpu.dot_dimension_numbers<[1], [0], [0], [1], [0, 0, 1, 1], [], []>} : vector<1x128xf32>, vector<128x8xf32>, vector<1x8xf32> -> vector<1x8xf32>
    %cst_17 = arith.constant 6.400000e+01 : f32
    %49 = vector.broadcast %cst_17 : f32 to vector<1x8xf32>
    %50 = arith.divf %48, %49 : vector<1x8xf32>
    %51 = arith.mulf %47, %47 : vector<1x8xf32>
    %52 = arith.subf %50, %51 : vector<1x8xf32>
    %cst_18 = arith.constant 0.000000e+00 : f32
    %53 = vector.broadcast %cst_18 : f32 to vector<1x8xf32>
    %54 = arith.maximumf %52, %53 : vector<1x8xf32>
    %cst_19 = arith.constant 9.99999974E-6 : f32
    %55 = vector.broadcast %cst_19 : f32 to vector<1x8xf32>
    %56 = arith.addf %54, %55 : vector<1x8xf32>
    %57 = math.rsqrt %56 : vector<1x8xf32>
    %cst_20 = arith.constant dense<0.000000e+00> : vector<1x128xf32>
    %58 = tpu.matmul %47, %28, %cst_20 {dimension_numbers = #tpu.dot_dimension_numbers<[1], [0], [0], [1], [0, 0, 1, 1], [], []>} : vector<1x8xf32>, vector<8x128xf32>, vector<1x128xf32> -> vector<1x128xf32>
    %cst_21 = arith.constant dense<0.000000e+00> : vector<1x128xf32>
    %59 = tpu.matmul %57, %28, %cst_21 {dimension_numbers = #tpu.dot_dimension_numbers<[1], [0], [0], [1], [0, 0, 1, 1], [], []>} : vector<1x8xf32>, vector<8x128xf32>, vector<1x128xf32> -> vector<1x128xf32>
    %c0_22 = arith.constant 0 : index
    %c0_23 = arith.constant 0 : index
    %60 = vector.load %arg4[%c0_22, %c0_23] : memref<1x128xf32, #tpu.memory_space<vmem>>, vector<1x128xf32>
    %61 = arith.mulf %60, %59 : vector<1x128xf32>
    %c0_24 = arith.constant 0 : index
    %c0_25 = arith.constant 0 : index
    %62 = vector.load %arg5[%c0_24, %c0_25] : memref<1x128xf32, #tpu.memory_space<vmem>>, vector<1x128xf32>
    %63 = arith.subf %2, %58 : vector<1x128xf32>
    %64 = arith.mulf %63, %61 : vector<1x128xf32>
    %65 = arith.addf %62, %64 : vector<1x128xf32>
    %66 = vector.broadcast %61 : vector<1x128xf32> to vector<16x128xf32>
    %67 = arith.mulf %26, %66 : vector<16x128xf32>
    %68 = vector.broadcast %65 : vector<1x128xf32> to vector<16x128xf32>
    %69 = arith.addf %67, %68 : vector<16x128xf32>
    %cst_26 = arith.constant 0.000000e+00 : f32
    %70 = vector.broadcast %cst_26 : f32 to vector<16x128xf32>
    %71 = arith.maximumf %69, %70 : vector<16x128xf32>
    %c0_27 = arith.constant 0 : index
    %c0_28 = arith.constant 0 : index
    %72 = vector.load %arg9[%c0_27, %c0_28] : memref<1x128xf32, #tpu.memory_space<vmem>>, vector<1x128xf32>
    %73 = arith.truncf %71 : vector<16x128xf32> to vector<16x128xbf16>
    %c0_29 = arith.constant 0 : index
    %c0_30 = arith.constant 0 : index
    %74 = vector.load %arg8[%c0_29, %c0_30] : memref<128x128xbf16, #tpu.memory_space<vmem>>, vector<128x128xbf16>
    %cst_31 = arith.constant dense<0.000000e+00> : vector<16x128xf32>
    %75 = tpu.matmul %73, %74, %cst_31 {dimension_numbers = #tpu.dot_dimension_numbers<[1], [0], [0], [1], [0, 0, 1, 1], [], []>} : vector<16x128xbf16>, vector<128x128xbf16>, vector<16x128xf32> -> vector<16x128xf32>
    %c0_32 = arith.constant 0 : index
    %c0_33 = arith.constant 0 : index
    %76 = vector.load %arg12[%c0_32, %c0_33] : memref<128x8xf32, #tpu.memory_space<vmem>>, vector<128x8xf32>
    %c0_34 = arith.constant 0 : index
    %c0_35 = arith.constant 0 : index
    %77 = vector.load %arg13[%c0_34, %c0_35] : memref<8x128xf32, #tpu.memory_space<vmem>>, vector<8x128xf32>
    %cst_36 = arith.constant dense<0.000000e+00> : vector<128xf32>
    %78 = vector.multi_reduction <add>, %75, %cst_36 [0] : vector<16x128xf32> to vector<128xf32>
    %79 = vector.shape_cast %78 : vector<128xf32> to vector<1x128xf32>
    %80 = arith.mulf %75, %75 : vector<16x128xf32>
    %cst_37 = arith.constant dense<0.000000e+00> : vector<128xf32>
    %81 = vector.multi_reduction <add>, %80, %cst_37 [0] : vector<16x128xf32> to vector<128xf32>
    %82 = vector.shape_cast %81 : vector<128xf32> to vector<1x128xf32>
    %cst_38 = arith.constant 1.600000e+01 : f32
    %83 = vector.broadcast %cst_38 : f32 to vector<1x128xf32>
    %84 = arith.mulf %83, %72 : vector<1x128xf32>
    %85 = arith.addf %79, %84 : vector<1x128xf32>
    %cst_39 = arith.constant 2.000000e+00 : f32
    %86 = vector.broadcast %cst_39 : f32 to vector<1x128xf32>
    %87 = arith.mulf %86, %72 : vector<1x128xf32>
    %88 = arith.mulf %87, %79 : vector<1x128xf32>
    %89 = arith.addf %82, %88 : vector<1x128xf32>
    %cst_40 = arith.constant 1.600000e+01 : f32
    %90 = vector.broadcast %cst_40 : f32 to vector<1x128xf32>
    %91 = arith.mulf %90, %72 : vector<1x128xf32>
    %92 = arith.mulf %91, %72 : vector<1x128xf32>
    %93 = arith.addf %89, %92 : vector<1x128xf32>
    %cst_41 = arith.constant dense<0.000000e+00> : vector<1x8xf32>
    %94 = tpu.matmul %85, %76, %cst_41 {dimension_numbers = #tpu.dot_dimension_numbers<[1], [0], [0], [1], [0, 0, 1, 1], [], []>} : vector<1x128xf32>, vector<128x8xf32>, vector<1x8xf32> -> vector<1x8xf32>
    %cst_42 = arith.constant 1.280000e+02 : f32
    %95 = vector.broadcast %cst_42 : f32 to vector<1x8xf32>
    %96 = arith.divf %94, %95 : vector<1x8xf32>
    %cst_43 = arith.constant dense<0.000000e+00> : vector<1x8xf32>
    %97 = tpu.matmul %93, %76, %cst_43 {dimension_numbers = #tpu.dot_dimension_numbers<[1], [0], [0], [1], [0, 0, 1, 1], [], []>} : vector<1x128xf32>, vector<128x8xf32>, vector<1x8xf32> -> vector<1x8xf32>
    %cst_44 = arith.constant 1.280000e+02 : f32
    %98 = vector.broadcast %cst_44 : f32 to vector<1x8xf32>
    %99 = arith.divf %97, %98 : vector<1x8xf32>
    %100 = arith.mulf %96, %96 : vector<1x8xf32>
    %101 = arith.subf %99, %100 : vector<1x8xf32>
    %cst_45 = arith.constant 0.000000e+00 : f32
    %102 = vector.broadcast %cst_45 : f32 to vector<1x8xf32>
    %103 = arith.maximumf %101, %102 : vector<1x8xf32>
    %cst_46 = arith.constant 9.99999974E-6 : f32
    %104 = vector.broadcast %cst_46 : f32 to vector<1x8xf32>
    %105 = arith.addf %103, %104 : vector<1x8xf32>
    %106 = math.rsqrt %105 : vector<1x8xf32>
    %cst_47 = arith.constant dense<0.000000e+00> : vector<1x128xf32>
    %107 = tpu.matmul %96, %77, %cst_47 {dimension_numbers = #tpu.dot_dimension_numbers<[1], [0], [0], [1], [0, 0, 1, 1], [], []>} : vector<1x8xf32>, vector<8x128xf32>, vector<1x128xf32> -> vector<1x128xf32>
    %cst_48 = arith.constant dense<0.000000e+00> : vector<1x128xf32>
    %108 = tpu.matmul %106, %77, %cst_48 {dimension_numbers = #tpu.dot_dimension_numbers<[1], [0], [0], [1], [0, 0, 1, 1], [], []>} : vector<1x8xf32>, vector<8x128xf32>, vector<1x128xf32> -> vector<1x128xf32>
    %c0_49 = arith.constant 0 : index
    %c0_50 = arith.constant 0 : index
    %109 = vector.load %arg10[%c0_49, %c0_50] : memref<1x128xf32, #tpu.memory_space<vmem>>, vector<1x128xf32>
    %110 = arith.mulf %109, %108 : vector<1x128xf32>
    %c0_51 = arith.constant 0 : index
    %c0_52 = arith.constant 0 : index
    %111 = vector.load %arg11[%c0_51, %c0_52] : memref<1x128xf32, #tpu.memory_space<vmem>>, vector<1x128xf32>
    %112 = arith.subf %72, %107 : vector<1x128xf32>
    %113 = arith.mulf %112, %110 : vector<1x128xf32>
    %114 = arith.addf %111, %113 : vector<1x128xf32>
    %115 = vector.broadcast %110 : vector<1x128xf32> to vector<16x128xf32>
    %116 = arith.mulf %75, %115 : vector<16x128xf32>
    %117 = vector.broadcast %114 : vector<1x128xf32> to vector<16x128xf32>
    %118 = arith.addf %116, %117 : vector<16x128xf32>
    %c0_53 = arith.constant 0 : index
    %c0_54 = arith.constant 0 : index
    %c0_55 = arith.constant 0 : index
    %119 = vector.load %arg14[%c0_53, %c0_54, %c0_55] : memref<1x16x128xf32, #tpu.memory_space<vmem>>, vector<1x16x128xf32>
    %120 = vector.shape_cast %119 : vector<1x16x128xf32> to vector<16x128xf32>
    %121 = vector.shape_cast %118 : vector<16x128xf32> to vector<1x16x128xf32>
    tpu.vector_store %arg14[%c0_53, %c0_54, %c0_55], %121 {strides = array<i32>} : memref<1x16x128xf32, #tpu.memory_space<vmem>>, vector<1x16x128xf32>,
    %cst_56 = arith.constant dense<0xFF800000> : vector<128xf32>
    %122 = vector.multi_reduction <maximumf>, %118, %cst_56 [0] : vector<16x128xf32> to vector<128xf32>
    %123 = vector.shape_cast %122 : vector<128xf32> to vector<1x128xf32>
    %c0_57 = arith.constant 0 : index
    %c0_58 = arith.constant 0 : index
    %c0_59 = arith.constant 0 : index
    %124 = vector.load %arg15[%c0_57, %c0_58, %c0_59] : memref<1x1x128xf32, #tpu.memory_space<vmem>>, vector<1x1x128xf32>
    %125 = vector.shape_cast %124 : vector<1x1x128xf32> to vector<1x128xf32>
    %126 = vector.shape_cast %123 : vector<1x128xf32> to vector<1x1x128xf32>
    tpu.vector_store %arg15[%c0_57, %c0_58, %c0_59], %126 {strides = array<i32>} : memref<1x1x128xf32, #tpu.memory_space<vmem>>, vector<1x1x128xf32>,
    return
  }
  func.func @transform_0(%arg0: i32) -> (i32, i32, i32) {
    %c0_i32 = arith.constant 0 : i32
    %c0_i32_0 = arith.constant 0 : i32
    %c0_i32_1 = arith.constant 0 : i32
    return %arg0, %c0_i32, %c0_i32_0 : i32, i32, i32
  }
  func.func @transform_1(%arg0: i32) -> (i32, i32) {
    %c0_i32 = arith.constant 0 : i32
    %c0_i32_0 = arith.constant 0 : i32
    %c0_i32_1 = arith.constant 0 : i32
    return %c0_i32, %c0_i32_0 : i32, i32
  }
  func.func @transform_2(%arg0: i32) -> (i32, i32) {
    %c0_i32 = arith.constant 0 : i32
    %c0_i32_0 = arith.constant 0 : i32
    %c0_i32_1 = arith.constant 0 : i32
    return %c0_i32, %c0_i32_0 : i32, i32
  }
  func.func @transform_3(%arg0: i32) -> (i32, i32) {
    %c0_i32 = arith.constant 0 : i32
    %c0_i32_0 = arith.constant 0 : i32
    %c0_i32_1 = arith.constant 0 : i32
    return %c0_i32, %c0_i32_0 : i32, i32
  }
  func.func @transform_4(%arg0: i32) -> (i32, i32) {
    %c0_i32 = arith.constant 0 : i32
    %c0_i32_0 = arith.constant 0 : i32
    %c0_i32_1 = arith.constant 0 : i32
    return %c0_i32, %c0_i32_0 : i32, i32
  }
  func.func @transform_5(%arg0: i32) -> (i32, i32) {
    %c0_i32 = arith.constant 0 : i32
    %c0_i32_0 = arith.constant 0 : i32
    %c0_i32_1 = arith.constant 0 : i32
    return %c0_i32, %c0_i32_0 : i32, i32
  }
  func.func @transform_6(%arg0: i32) -> (i32, i32) {
    %c0_i32 = arith.constant 0 : i32
    %c0_i32_0 = arith.constant 0 : i32
    %c0_i32_1 = arith.constant 0 : i32
    return %c0_i32, %c0_i32_0 : i32, i32
  }
  func.func @transform_7(%arg0: i32) -> (i32, i32) {
    %c0_i32 = arith.constant 0 : i32
    %c0_i32_0 = arith.constant 0 : i32
    %c0_i32_1 = arith.constant 0 : i32
    return %c0_i32, %c0_i32_0 : i32, i32
  }
  func.func @transform_8(%arg0: i32) -> (i32, i32) {
    %c0_i32 = arith.constant 0 : i32
    %c0_i32_0 = arith.constant 0 : i32
    %c0_i32_1 = arith.constant 0 : i32
    return %c0_i32, %c0_i32_0 : i32, i32
  }
  func.func @transform_9(%arg0: i32) -> (i32, i32) {
    %c0_i32 = arith.constant 0 : i32
    %c0_i32_0 = arith.constant 0 : i32
    %c0_i32_1 = arith.constant 0 : i32
    return %c0_i32, %c0_i32_0 : i32, i32
  }
  func.func @transform_10(%arg0: i32) -> (i32, i32) {
    %c0_i32 = arith.constant 0 : i32
    %c0_i32_0 = arith.constant 0 : i32
    %c0_i32_1 = arith.constant 0 : i32
    return %c0_i32, %c0_i32_0 : i32, i32
  }
  func.func @transform_11(%arg0: i32) -> (i32, i32) {
    %c0_i32 = arith.constant 0 : i32
    %c0_i32_0 = arith.constant 0 : i32
    %c0_i32_1 = arith.constant 0 : i32
    return %c0_i32, %c0_i32_0 : i32, i32
  }
  func.func @transform_12(%arg0: i32) -> (i32, i32) {
    %c0_i32 = arith.constant 0 : i32
    %c0_i32_0 = arith.constant 0 : i32
    %c0_i32_1 = arith.constant 0 : i32
    return %c0_i32, %c0_i32_0 : i32, i32
  }
  func.func @transform_13(%arg0: i32) -> (i32, i32, i32) {
    %c0_i32 = arith.constant 0 : i32
    %c0_i32_0 = arith.constant 0 : i32
    %c0_i32_1 = arith.constant 0 : i32
    return %arg0, %c0_i32, %c0_i32_0 : i32, i32, i32
  }
  func.func @transform_14(%arg0: i32) -> (i32, i32, i32) {
    %c0_i32 = arith.constant 0 : i32
    %c0_i32_0 = arith.constant 0 : i32
    %c0_i32_1 = arith.constant 0 : i32
    return %arg0, %c0_i32, %c0_i32_0 : i32, i32, i32
  }
}

</mosaic_0001>

<llo_original>
// kernel: tpu_custom_call.1
$region0: #{tpu_custom_call.1}
  #allocation0 [shape = 'u32[]', space=smem, size = 0x4, offset = 0x4, fixed_abs, tag = 'smem constant byte address 0x4 - core index']
  #allocation1 [shape = 'u32[144,128]{1,0:T(1,128)}', space=vmem, size = 0x12000, scoped, tag = 'internal scratch']
  %s0 = inlined_call_operand.hbm [shape: f32[2,16,4], index: 0, kind: input, shape index: {}]
  %s1 = inlined_call_operand.hbm [shape: f32[4,128], index: 1, kind: input, shape index: {}]
  %s2 = inlined_call_operand.hbm [shape: f32[1,128], index: 2, kind: input, shape index: {}]
  %s3 = inlined_call_operand.hbm [shape: f32[1,128], index: 3, kind: input, shape index: {}]
  %s4 = inlined_call_operand.hbm [shape: f32[1,128], index: 4, kind: input, shape index: {}]
  %s5 = inlined_call_operand.hbm [shape: f32[128,8], index: 5, kind: input, shape index: {}]
  %s6 = inlined_call_operand.hbm [shape: f32[8,128], index: 6, kind: input, shape index: {}]
  %s7 = inlined_call_operand.hbm [shape: bf16[128,128], index: 7, kind: input, shape index: {}]
  %s8 = inlined_call_operand.hbm [shape: f32[1,128], index: 8, kind: input, shape index: {}]
  %s9 = inlined_call_operand.hbm [shape: f32[1,128], index: 9, kind: input, shape index: {}]
  %s10 = inlined_call_operand.hbm [shape: f32[1,128], index: 10, kind: input, shape index: {}]
  %s11 = inlined_call_operand.hbm [shape: f32[128,8], index: 11, kind: input, shape index: {}]
  %s12 = inlined_call_operand.hbm [shape: f32[8,128], index: 12, kind: input, shape index: {}]
  %s13 = inlined_call_operand.hbm [shape: f32[2,16,128], index: 13, kind: output, shape index: {0}]
  %s14 = inlined_call_operand.hbm [shape: f32[2,1,128], index: 14, kind: output, shape index: {1}]
  %15 = xla_tuple %s13, %s14
  %s16 = sld [smem:[#allocation0]]
  $region145: #{tpu_custom_call.1} parent=0
    _
  %s18 = ssub.s32 1, %s16
  %s19 = scalar_select 0, %s18, %s16
  $region1: #{tpu_custom_call.1} parent=0
    #allocation2 [shape = 'u8[16384]{0}', space=vmem, size = 0x4000, scoped, tag = 'input window, operand 0']
    #allocation3 [shape = 's32[2]{0}', space=sflag, size = 0x8, scoped, tag = 'scoped memory for tpu_custom_call.1']
    #allocation4 [shape = 's32[2]{0}', space=sflag, size = 0x8, scoped, tag = 'scoped memory for tpu_custom_call.1']
    #allocation5 [shape = 'u8[2048]{0}', space=vmem, size = 0x800, scoped, tag = 'input window, operand 1, single buffered']
    #allocation6 [shape = 's32[1]{0}', space=sflag, size = 0x4, scoped, tag = 'scoped memory for tpu_custom_call.1']
    #allocation7 [shape = 'u8[512]{0}', space=vmem, size = 0x400, scoped, tag = 'input window, operand 2, single buffered']
    #allocation8 [shape = 'u8[512]{0}', space=vmem, size = 0x400, scoped, tag = 'input window, operand 3, single buffered']
    #allocation9 [shape = 's32[1]{0}', space=sflag, size = 0x4, scoped, tag = 'scoped memory for tpu_custom_call.1']
    #allocation10 [shape = 'u8[512]{0}', space=vmem, size = 0x400, scoped, tag = 'input window, operand 4, single buffered']
    #allocation11 [shape = 'u8[65536]{0}', space=vmem, size = 0x10000, scoped, tag = 'input window, operand 5, single buffered']
    #allocation12 [shape = 's32[1]{0}', space=sflag, size = 0x4, scoped, tag = 'scoped memory for tpu_custom_call.1']
    #allocation13 [shape = 'u8[4096]{0}', space=vmem, size = 0x1000, scoped, tag = 'input window, operand 6, single buffered']
    #allocation14 [shape = 'u8[32768]{0}', space=vmem, size = 0x8000, scoped, tag = 'input window, operand 7, single buffered']
    #allocation15 [shape = 's32[1]{0}', space=sflag, size = 0x4, scoped, tag = 'scoped memory for tpu_custom_call.1']
    #allocation16 [shape = 'u8[512]{0}', space=vmem, size = 0x400, scoped, tag = 'input window, operand 8, single buffered']
    #allocation17 [shape = 'u8[512]{0}', space=vmem, size = 0x400, scoped, tag = 'input window, operand 9, single buffered']
    #allocation18 [shape = 's32[1]{0}', space=sflag, size = 0x4, scoped, tag = 'scoped memory for tpu_custom_call.1']
    #allocation19 [shape = 'u8[512]{0}', space=vmem, size = 0x400, scoped, tag = 'input window, operand 10, single buffered']
    #allocation20 [shape = 'u8[65536]{0}', space=vmem, size = 0x10000, scoped, tag = 'input window, operand 11, single buffered']
    #allocation21 [shape = 's32[1]{0}', space=sflag, size = 0x4, scoped, tag = 'scoped memory for tpu_custom_call.1']
    #allocation22 [shape = 'u8[4096]{0}', space=vmem, size = 0x1000, scoped, tag = 'input window, operand 12, single buffered']
    #allocation23 [shape = 'u8[16384]{0}', space=vmem, size = 0x4000, scoped, tag = 'output window, operand 0']
    #allocation24 [shape = 'u8[1024]{0}', space=vmem, size = 0x400, scoped, tag = 'output window, operand 1']
    #allocation25 [shape = 's32[2]{0}', space=sflag, size = 0x8, scoped, tag = 'scoped memory for tpu_custom_call.1']
    %20 = vsyncpa [#allocation3], 0
    %s21 = scalar_lea.sflag [#allocation3], 1
    %22 = vsyncpa %s21, 0
    %23 = vsyncpa [#allocation6], 0
    %24 = vsyncpa [#allocation9], 0
    %25 = vsyncpa [#allocation12], 0
    %26 = vsyncpa [#allocation15], 0
    %27 = vsyncpa [#allocation18], 0
    %28 = vsyncpa [#allocation21], 0
    %29 = vsyncpa [#allocation4], 0
    %s30 = scalar_lea.sflag [#allocation4], 1
    %31 = vsyncpa %s30, 0
    %32 = vsyncpa [#allocation25], 0
    %s33 = scalar_lea.sflag [#allocation25], 1
    %34 = vsyncpa %s33, 0
    loop: start=0, step=1, limit=4
    $region2: #{tpu_custom_call.1} parent=1 // loop_pre_header
      _
    $region3: #{tpu_custom_call.1} parent=1 // loop_header
      %s36 = sphi 0, %s40
      %p37 = scmp.ge.s32.totalorder %s36, 4
      %s46 = sphi 0, %s48
      %s49 = sphi 0, %s46
      %s50 = sphi 0, %s49
      %s66 = sphi 0, %s50
      %s70 = sphi 0, %s70
      %s72 = sphi 0, %s70
      %s73 = sphi 0, %s72
      %s87 = sphi 0, %s73
      %s91 = sphi 0, %s91
      %s93 = sphi 0, %s91
      %s94 = sphi 0, %s93
      %s108 = sphi 0, %s94
      %s112 = sphi 0, %s112
      %s114 = sphi 0, %s112
      %s115 = sphi 0, %s114
      %s129 = sphi 0, %s115
      %s133 = sphi 0, %s133
      %s135 = sphi 0, %s133
      %s136 = sphi 0, %s135
      %s150 = sphi 0, %s136
      %s154 = sphi 0, %s154
      %s156 = sphi 0, %s154
      %s157 = sphi 0, %s156
      %s171 = sphi 0, %s157
      %s175 = sphi 0, %s175
      %s177 = sphi 0, %s175
      %s178 = sphi 0, %s177
      %s192 = sphi 0, %s178
      %s196 = sphi 0, %s196
      %s198 = sphi 0, %s196
      %s199 = sphi 0, %s198
      %s213 = sphi 0, %s199
      %s217 = sphi 0, %s217
      %s219 = sphi 0, %s217
      %s220 = sphi 0, %s219
      %s234 = sphi 0, %s220
      %s238 = sphi 0, %s238
      %s240 = sphi 0, %s238
      %s241 = sphi 0, %s240
      %s255 = sphi 0, %s241
      %s259 = sphi 0, %s259
      %s261 = sphi 0, %s259
      %s262 = sphi 0, %s261
      %s276 = sphi 0, %s262
      %s280 = sphi 0, %s280
      %s282 = sphi 0, %s280
      %s283 = sphi 0, %s282
      %s297 = sphi 0, %s283
      %s301 = sphi 0, %s301
      %s303 = sphi 0, %s301
      %s304 = sphi 0, %s303
      %s318 = sphi 0, %s304
      %s324 = sphi 0, %s326
      %s327 = sphi 0, %s324
      %s328 = sphi 0, %s327
      %s344 = sphi 0, %s328
      %s350 = sphi 0, %s352
      %s353 = sphi 0, %s350
      %s354 = sphi 0, %s353
      %s370 = sphi 0, %s354
    $region4: #{tpu_custom_call.1} parent=1 // loop_header_branch
      %39 = sbr.rel (%p37) target = $region8
    $region5: #{tpu_custom_call.1} parent=1 // loop_body
      %s41 = ssub.s32 %s36, 1
      %s42 = ssub.s32 %s36, 2
      %s43 = sadd.s32 %s36, 1
      %s44 = ssub.s32 %s36, %s43
      %p45 = scmp.eq.s32.totalorder %s44, 0
      %s47 = sadd.s32 %s46, 1
      %s48 = scalar_select %p45, %s46, %s47
      %p51 = pneg %p45
      %p52 = scmp.eq.s32.totalorder %s36, 1
      %p53 = por %p51, %p52
      %p54 = scmp.ne.s32.totalorder %s46, %s49
      %p55 = scmp.eq.s32.totalorder %s36, 0
      %p56 = por %p54, %p55
      %p57 = scmp.ne.s32.totalorder %s46, %s49
      %p58 = scmp.eq.s32.totalorder %s41, 1
      %p59 = por %p57, %p58
      %p60 = scmp.ne.s32.totalorder %s49, %s50
      %p61 = scmp.eq.s32.totalorder %s41, 0
      %p62 = por %p60, %p61
      %p63 = scmp.ne.s32.totalorder %s49, %s50
      %p64 = scmp.eq.s32.totalorder %s42, 1
      %p65 = por %p63, %p64
      %p67 = scmp.ne.s32.totalorder %s50, %s66
      %p68 = scmp.eq.s32.totalorder %s42, 0
      %p69 = por %p67, %p68
      %s71 = sadd.s32 %s70, 1
      %p74 = scmp.eq.s32.totalorder %s36, 1
      %p75 = scmp.ne.s32.totalorder %s70, %s72
      %p76 = scmp.eq.s32.totalorder %s36, 0
      %p77 = por %p75, %p76
      %p78 = scmp.ne.s32.totalorder %s70, %s72
      %p79 = scmp.eq.s32.totalorder %s41, 1
      %p80 = por %p78, %p79
      %p81 = scmp.ne.s32.totalorder %s72, %s73
      %p82 = scmp.eq.s32.totalorder %s41, 0
      %p83 = por %p81, %p82
      %p84 = scmp.ne.s32.totalorder %s72, %s73
      %p85 = scmp.eq.s32.totalorder %s42, 1
      %p86 = por %p84, %p85
      %p88 = scmp.ne.s32.totalorder %s73, %s87
      %p89 = scmp.eq.s32.totalorder %s42, 0
      %p90 = por %p88, %p89
      %s92 = sadd.s32 %s91, 1
      %p95 = scmp.eq.s32.totalorder %s36, 1
      %p96 = scmp.ne.s32.totalorder %s91, %s93
      %p97 = scmp.eq.s32.totalorder %s36, 0
      %p98 = por %p96, %p97
      %p99 = scmp.ne.s32.totalorder %s91, %s93
      %p100 = scmp.eq.s32.totalorder %s41, 1
      %p101 = por %p99, %p100
      %p102 = scmp.ne.s32.totalorder %s93, %s94
      %p103 = scmp.eq.s32.totalorder %s41, 0
      %p104 = por %p102, %p103
      %p105 = scmp.ne.s32.totalorder %s93, %s94
      %p106 = scmp.eq.s32.totalorder %s42, 1
      %p107 = por %p105, %p106
      %p109 = scmp.ne.s32.totalorder %s94, %s108
      %p110 = scmp.eq.s32.totalorder %s42, 0
      %p111 = por %p109, %p110
      %s113 = sadd.s32 %s112, 1
      %p116 = scmp.eq.s32.totalorder %s36, 1
      %p117 = scmp.ne.s32.totalorder %s112, %s114
      %p118 = scmp.eq.s32.totalorder %s36, 0
      %p119 = por %p117, %p118
      %p120 = scmp.ne.s32.totalorder %s112, %s114
      %p121 = scmp.eq.s32.totalorder %s41, 1
      %p122 = por %p120, %p121
      %p123 = scmp.ne.s32.totalorder %s114, %s115
      %p124 = scmp.eq.s32.totalorder %s41, 0
      %p125 = por %p123, %p124
      %p126 = scmp.ne.s32.totalorder %s114, %s115
      %p127 = scmp.eq.s32.totalorder %s42, 1
      %p128 = por %p126, %p127
      %p130 = scmp.ne.s32.totalorder %s115, %s129
      %p131 = scmp.eq.s32.totalorder %s42, 0
      %p132 = por %p130, %p131
      %s134 = sadd.s32 %s133, 1
      %p137 = scmp.eq.s32.totalorder %s36, 1
      %p138 = scmp.ne.s32.totalorder %s133, %s135
      %p139 = scmp.eq.s32.totalorder %s36, 0
      %p140 = por %p138, %p139
      %p141 = scmp.ne.s32.totalorder %s133, %s135
      %p142 = scmp.eq.s32.totalorder %s41, 1
      %p143 = por %p141, %p142
      %p144 = scmp.ne.s32.totalorder %s135, %s136
      %p145 = scmp.eq.s32.totalorder %s41, 0
      %p146 = por %p144, %p145
      %p147 = scmp.ne.s32.totalorder %s135, %s136
      %p148 = scmp.eq.s32.totalorder %s42, 1
      %p149 = por %p147, %p148
      %p151 = scmp.ne.s32.totalorder %s136, %s150
      %p152 = scmp.eq.s32.totalorder %s42, 0
      %p153 = por %p151, %p152
      %s155 = sadd.s32 %s154, 1
      %p158 = scmp.eq.s32.totalorder %s36, 1
      %p159 = scmp.ne.s32.totalorder %s154, %s156
      %p160 = scmp.eq.s32.totalorder %s36, 0
      %p161 = por %p159, %p160
      %p162 = scmp.ne.s32.totalorder %s154, %s156
      %p163 = scmp.eq.s32.totalorder %s41, 1
      %p164 = por %p162, %p163
      %p165 = scmp.ne.s32.totalorder %s156, %s157
      %p166 = scmp.eq.s32.totalorder %s41, 0
      %p167 = por %p165, %p166
      %p168 = scmp.ne.s32.totalorder %s156, %s157
      %p169 = scmp.eq.s32.totalorder %s42, 1
      %p170 = por %p168, %p169
      %p172 = scmp.ne.s32.totalorder %s157, %s171
      %p173 = scmp.eq.s32.totalorder %s42, 0
      %p174 = por %p172, %p173
      %s176 = sadd.s32 %s175, 1
      %p179 = scmp.eq.s32.totalorder %s36, 1
      %p180 = scmp.ne.s32.totalorder %s175, %s177
      %p181 = scmp.eq.s32.totalorder %s36, 0
      %p182 = por %p180, %p181
      %p183 = scmp.ne.s32.totalorder %s175, %s177
      %p184 = scmp.eq.s32.totalorder %s41, 1
      %p185 = por %p183, %p184
      %p186 = scmp.ne.s32.totalorder %s177, %s178
      %p187 = scmp.eq.s32.totalorder %s41, 0
      %p188 = por %p186, %p187
      %p189 = scmp.ne.s32.totalorder %s177, %s178
      %p190 = scmp.eq.s32.totalorder %s42, 1
      %p191 = por %p189, %p190
      %p193 = scmp.ne.s32.totalorder %s178, %s192
      %p194 = scmp.eq.s32.totalorder %s42, 0
      %p195 = por %p193, %p194
      %s197 = sadd.s32 %s196, 1
      %p200 = scmp.eq.s32.totalorder %s36, 1
      %p201 = scmp.ne.s32.totalorder %s196, %s198
      %p202 = scmp.eq.s32.totalorder %s36, 0
      %p203 = por %p201, %p202
      %p204 = scmp.ne.s32.totalorder %s196, %s198
      %p205 = scmp.eq.s32.totalorder %s41, 1
      %p206 = por %p204, %p205
      %p207 = scmp.ne.s32.totalorder %s198, %s199
      %p208 = scmp.eq.s32.totalorder %s41, 0
      %p209 = por %p207, %p208
      %p210 = scmp.ne.s32.totalorder %s198, %s199
      %p211 = scmp.eq.s32.totalorder %s42, 1
      %p212 = por %p210, %p211
      %p214 = scmp.ne.s32.totalorder %s199, %s213
      %p215 = scmp.eq.s32.totalorder %s42, 0
      %p216 = por %p214, %p215
      %s218 = sadd.s32 %s217, 1
      %p221 = scmp.eq.s32.totalorder %s36, 1
      %p222 = scmp.ne.s32.totalorder %s217, %s219
      %p223 = scmp.eq.s32.totalorder %s36, 0
      %p224 = por %p222, %p223
      %p225 = scmp.ne.s32.totalorder %s217, %s219
      %p226 = scmp.eq.s32.totalorder %s41, 1
      %p227 = por %p225, %p226
      %p228 = scmp.ne.s32.totalorder %s219, %s220
      %p229 = scmp.eq.s32.totalorder %s41, 0
      %p230 = por %p228, %p229
      %p231 = scmp.ne.s32.totalorder %s219, %s220
      %p232 = scmp.eq.s32.totalorder %s42, 1
      %p233 = por %p231, %p232
      %p235 = scmp.ne.s32.totalorder %s220, %s234
      %p236 = scmp.eq.s32.totalorder %s42, 0
      %p237 = por %p235, %p236
      %s239 = sadd.s32 %s238, 1
      %p242 = scmp.eq.s32.totalorder %s36, 1
      %p243 = scmp.ne.s32.totalorder %s238, %s240
      %p244 = scmp.eq.s32.totalorder %s36, 0
      %p245 = por %p243, %p244
      %p246 = scmp.ne.s32.totalorder %s238, %s240
      %p247 = scmp.eq.s32.totalorder %s41, 1
      %p248 = por %p246, %p247
      %p249 = scmp.ne.s32.totalorder %s240, %s241
      %p250 = scmp.eq.s32.totalorder %s41, 0
      %p251 = por %p249, %p250
      %p252 = scmp.ne.s32.totalorder %s240, %s241
      %p253 = scmp.eq.s32.totalorder %s42, 1
      %p254 = por %p252, %p253
      %p256 = scmp.ne.s32.totalorder %s241, %s255
      %p257 = scmp.eq.s32.totalorder %s42, 0
      %p258 = por %p256, %p257
      %s260 = sadd.s32 %s259, 1
      %p263 = scmp.eq.s32.totalorder %s36, 1
      %p264 = scmp.ne.s32.totalorder %s259, %s261
      %p265 = scmp.eq.s32.totalorder %s36, 0
      %p266 = por %p264, %p265
      %p267 = scmp.ne.s32.totalorder %s259, %s261
      %p268 = scmp.eq.s32.totalorder %s41, 1
      %p269 = por %p267, %p268
      %p270 = scmp.ne.s32.totalorder %s261, %s262
      %p271 = scmp.eq.s32.totalorder %s41, 0
      %p272 = por %p270, %p271
      %p273 = scmp.ne.s32.totalorder %s261, %s262
      %p274 = scmp.eq.s32.totalorder %s42, 1
      %p275 = por %p273, %p274
      %p277 = scmp.ne.s32.totalorder %s262, %s276
      %p278 = scmp.eq.s32.totalorder %s42, 0
      %p279 = por %p277, %p278
      %s281 = sadd.s32 %s280, 1
      %p284 = scmp.eq.s32.totalorder %s36, 1
      %p285 = scmp.ne.s32.totalorder %s280, %s282
      %p286 = scmp.eq.s32.totalorder %s36, 0
      %p287 = por %p285, %p286
      %p288 = scmp.ne.s32.totalorder %s280, %s282
      %p289 = scmp.eq.s32.totalorder %s41, 1
      %p290 = por %p288, %p289
      %p291 = scmp.ne.s32.totalorder %s282, %s283
      %p292 = scmp.eq.s32.totalorder %s41, 0
      %p293 = por %p291, %p292
      %p294 = scmp.ne.s32.totalorder %s282, %s283
      %p295 = scmp.eq.s32.totalorder %s42, 1
      %p296 = por %p294, %p295
      %p298 = scmp.ne.s32.totalorder %s283, %s297
      %p299 = scmp.eq.s32.totalorder %s42, 0
      %p300 = por %p298, %p299
      %s302 = sadd.s32 %s301, 1
      %p305 = scmp.eq.s32.totalorder %s36, 1
      %p306 = scmp.ne.s32.totalorder %s301, %s303
      %p307 = scmp.eq.s32.totalorder %s36, 0
      %p308 = por %p306, %p307
      %p309 = scmp.ne.s32.totalorder %s301, %s303
      %p310 = scmp.eq.s32.totalorder %s41, 1
      %p311 = por %p309, %p310
      %p312 = scmp.ne.s32.totalorder %s303, %s304
      %p313 = scmp.eq.s32.totalorder %s41, 0
      %p314 = por %p312, %p313
      %p315 = scmp.ne.s32.totalorder %s303, %s304
      %p316 = scmp.eq.s32.totalorder %s42, 1
      %p317 = por %p315, %p316
      %p319 = scmp.ne.s32.totalorder %s304, %s318
      %p320 = scmp.eq.s32.totalorder %s42, 0
      %p321 = por %p319, %p320
      %s322 = ssub.s32 %s36, %s43
      %p323 = scmp.eq.s32.totalorder %s322, 0
      %s325 = sadd.s32 %s324, 1
      %s326 = scalar_select %p323, %s324, %s325
      %p329 = pneg %p323
      %p330 = scmp.eq.s32.totalorder %s36, 1
      %p331 = por %p329, %p330
      %p332 = scmp.ne.s32.totalorder %s324, %s327
      %p333 = scmp.eq.s32.totalorder %s36, 0
      %p334 = por %p332, %p333
      %p335 = scmp.ne.s32.totalorder %s324, %s327
      %p336 = scmp.eq.s32.totalorder %s41, 1
      %p337 = por %p335, %p336
      %p338 = scmp.ne.s32.totalorder %s327, %s328
      %p339 = scmp.eq.s32.totalorder %s41, 0
      %p340 = por %p338, %p339
      %p341 = scmp.ne.s32.totalorder %s327, %s328
      %p342 = scmp.eq.s32.totalorder %s42, 1
      %p343 = por %p341, %p342
      %p345 = scmp.ne.s32.totalorder %s328, %s344
      %p346 = scmp.eq.s32.totalorder %s42, 0
      %p347 = por %p345, %p346
      %s348 = ssub.s32 %s36, %s43
      %p349 = scmp.eq.s32.totalorder %s348, 0
      %s351 = sadd.s32 %s350, 1
      %s352 = scalar_select %p349, %s350, %s351
      %p355 = pneg %p349
      %p356 = scmp.eq.s32.totalorder %s36, 1
      %p357 = por %p355, %p356
      %p358 = scmp.ne.s32.totalorder %s350, %s353
      %p359 = scmp.eq.s32.totalorder %s36, 0
      %p360 = por %p358, %p359
      %p361 = scmp.ne.s32.totalorder %s350, %s353
      %p362 = scmp.eq.s32.totalorder %s41, 1
      %p363 = por %p361, %p362
      %p364 = scmp.ne.s32.totalorder %s353, %s354
      %p365 = scmp.eq.s32.totalorder %s41, 0
      %p366 = por %p364, %p365
      %p367 = scmp.ne.s32.totalorder %s353, %s354
      %p368 = scmp.eq.s32.totalorder %s42, 1
      %p369 = por %p367, %p368
      %p371 = scmp.ne.s32.totalorder %s354, %s370
      %p372 = scmp.eq.s32.totalorder %s42, 0
      %p373 = por %p371, %p372
      %p374 = scmp.le.s32.totalorder 1, %s36
      %p375 = scmp.lt.s32.totalorder %s36, 3
      %p376 = pnand %p374, %p375
      %p377 = pneg %p376
      // Predicated region
      $region9: #{tpu_custom_call.1} parent=5 // pred_check
        _
      $region10: #{tpu_custom_call.1} parent=5 // pred_check_branch
        %379 = sbr.rel (%p376) target = $region12
      $region11: #{tpu_custom_call.1} parent=5 // pred_region
        %s380 = ssub.s32 %s36, 1
        // Predicated region
        $region13: #{tpu_custom_call.1} parent=11 // pred_check
          %p381 = pneg %p83
        $region14: #{tpu_custom_call.1} parent=11 // pred_check_branch
          %383 = sbr.rel (%p381) target = $region16
        $region15: #{tpu_custom_call.1} parent=11 // pred_region
          %s385 = ssub.s32 64, 64
          %386 = vsyncadd [#allocation6], %s385
          %s388 = sshll.u32 [#allocation5], 4
          %s389 = int_to_ptr.vmem [resolvable:$true] %s388
          %391 = dma.hbm_to_vmem [thread:$0]  %s1, 64, %s389, [#allocation6]
        $region16: #{tpu_custom_call.1} parent=11 // pred_fallthru
          _
        // Predicated region
        $region17: #{tpu_custom_call.1} parent=11 // pred_check
          %p392 = pneg %p104
        $region18: #{tpu_custom_call.1} parent=11 // pred_check_branch
          %394 = sbr.rel (%p392) target = $region20
        $region19: #{tpu_custom_call.1} parent=11 // pred_region
          %s396 = ssub.s32 16, 16
          %397 = vsyncadd [#allocation6], %s396
          %s399 = sshll.u32 [#allocation7], 4
          %s400 = int_to_ptr.vmem [resolvable:$true] %s399
          %402 = dma.hbm_to_vmem [thread:$0]  %s2, 16, %s400, [#allocation6]
        $region20: #{tpu_custom_call.1} parent=11 // pred_fallthru
          _
        // Predicated region
        $region21: #{tpu_custom_call.1} parent=11 // pred_check
          %p403 = pneg %p125
        $region22: #{tpu_custom_call.1} parent=11 // pred_check_branch
          %405 = sbr.rel (%p403) target = $region24
        $region23: #{tpu_custom_call.1} parent=11 // pred_region
          %s407 = ssub.s32 16, 16
          %408 = vsyncadd [#allocation9], %s407
          %s410 = sshll.u32 [#allocation8], 4
          %s411 = int_to_ptr.vmem [resolvable:$true] %s410
          %413 = dma.hbm_to_vmem [thread:$0]  %s3, 16, %s411, [#allocation9]
        $region24: #{tpu_custom_call.1} parent=11 // pred_fallthru
          _
        // Predicated region
        $region25: #{tpu_custom_call.1} parent=11 // pred_check
          %p414 = pneg %p146
        $region26: #{tpu_custom_call.1} parent=11 // pred_check_branch
          %416 = sbr.rel (%p414) target = $region28
        $region27: #{tpu_custom_call.1} parent=11 // pred_region
          %s418 = ssub.s32 16, 16
          %419 = vsyncadd [#allocation9], %s418
          %s421 = sshll.u32 [#allocation10], 4
          %s422 = int_to_ptr.vmem [resolvable:$true] %s421
          %424 = dma.hbm_to_vmem [thread:$0]  %s4, 16, %s422, [#allocation9]
        $region28: #{tpu_custom_call.1} parent=11 // pred_fallthru
          _
        // Predicated region
        $region29: #{tpu_custom_call.1} parent=11 // pred_check
          %p425 = pneg %p167
        $region30: #{tpu_custom_call.1} parent=11 // pred_check_branch
          %427 = sbr.rel (%p425) target = $region32
        $region31: #{tpu_custom_call.1} parent=11 // pred_region
          %s429 = ssub.s32 2048, 2048
          %430 = vsyncadd [#allocation12], %s429
          %s431 = sshll.u32 [#allocation11], 4
          %s432 = int_to_ptr.vmem [resolvable:$true] %s431
          %437 = dma.hbm_to_vmem [thread:$0]  %s5, 2048, %s432, [#allocation12], 128, 128, 8
        $region32: #{tpu_custom_call.1} parent=11 // pred_fallthru
          _
        // Predicated region
        $region33: #{tpu_custom_call.1} parent=11 // pred_check
          %p438 = pneg %p188
        $region34: #{tpu_custom_call.1} parent=11 // pred_check_branch
          %440 = sbr.rel (%p438) target = $region36
        $region35: #{tpu_custom_call.1} parent=11 // pred_region
          %s442 = ssub.s32 128, 128
          %443 = vsyncadd [#allocation12], %s442
          %s445 = sshll.u32 [#allocation13], 4
          %s446 = int_to_ptr.vmem [resolvable:$true] %s445
          %448 = dma.hbm_to_vmem [thread:$0]  %s6, 128, %s446, [#allocation12]
        $region36: #{tpu_custom_call.1} parent=11 // pred_fallthru
          _
        // Predicated region
        $region37: #{tpu_custom_call.1} parent=11 // pred_check
          %p449 = pneg %p209
        $region38: #{tpu_custom_call.1} parent=11 // pred_check_branch
          %451 = sbr.rel (%p449) target = $region40
        $region39: #{tpu_custom_call.1} parent=11 // pred_region
          %s453 = ssub.s32 1024, 1024
          %454 = vsyncadd [#allocation15], %s453
          %s455 = sshll.u32 [#allocation14], 4
          %s456 = int_to_ptr.vmem [resolvable:$true] %s455
          %461 = dma.hbm_to_vmem [thread:$0]  %s7, 1024, %s456, [#allocation15], 64, 64, 4
        $region40: #{tpu_custom_call.1} parent=11 // pred_fallthru
          _
        // Predicated region
        $region41: #{tpu_custom_call.1} parent=11 // pred_check
          %p462 = pneg %p230
        $region42: #{tpu_custom_call.1} parent=11 // pred_check_branch
          %464 = sbr.rel (%p462) target = $region44
        $region43: #{tpu_custom_call.1} parent=11 // pred_region
          %s466 = ssub.s32 16, 16
          %467 = vsyncadd [#allocation15], %s466
          %s469 = sshll.u32 [#allocation16], 4
          %s470 = int_to_ptr.vmem [resolvable:$true] %s469
          %472 = dma.hbm_to_vmem [thread:$0]  %s8, 16, %s470, [#allocation15]
        $region44: #{tpu_custom_call.1} parent=11 // pred_fallthru
          _
        // Predicated region
        $region45: #{tpu_custom_call.1} parent=11 // pred_check
          %p473 = pneg %p251
        $region46: #{tpu_custom_call.1} parent=11 // pred_check_branch
          %475 = sbr.rel (%p473) target = $region48
        $region47: #{tpu_custom_call.1} parent=11 // pred_region
          %s477 = ssub.s32 16, 16
          %478 = vsyncadd [#allocation18], %s477
          %s480 = sshll.u32 [#allocation17], 4
          %s481 = int_to_ptr.vmem [resolvable:$true] %s480
          %483 = dma.hbm_to_vmem [thread:$0]  %s9, 16, %s481, [#allocation18]
        $region48: #{tpu_custom_call.1} parent=11 // pred_fallthru
          _
        // Predicated region
        $region49: #{tpu_custom_call.1} parent=11 // pred_check
          %p484 = pneg %p272
        $region50: #{tpu_custom_call.1} parent=11 // pred_check_branch
          %486 = sbr.rel (%p484) target = $region52
        $region51: #{tpu_custom_call.1} parent=11 // pred_region
          %s488 = ssub.s32 16, 16
          %489 = vsyncadd [#allocation18], %s488
          %s491 = sshll.u32 [#allocation19], 4
          %s492 = int_to_ptr.vmem [resolvable:$true] %s491
          %494 = dma.hbm_to_vmem [thread:$0]  %s10, 16, %s492, [#allocation18]
        $region52: #{tpu_custom_call.1} parent=11 // pred_fallthru
          _
        // Predicated region
        $region53: #{tpu_custom_call.1} parent=11 // pred_check
          %p495 = pneg %p293
        $region54: #{tpu_custom_call.1} parent=11 // pred_check_branch
          %497 = sbr.rel (%p495) target = $region56
        $region55: #{tpu_custom_call.1} parent=11 // pred_region
          %s499 = ssub.s32 2048, 2048
          %500 = vsyncadd [#allocation21], %s499
          %s501 = sshll.u32 [#allocation20], 4
          %s502 = int_to_ptr.vmem [resolvable:$true] %s501
          %507 = dma.hbm_to_vmem [thread:$0]  %s11, 2048, %s502, [#allocation21], 128, 128, 8
        $region56: #{tpu_custom_call.1} parent=11 // pred_fallthru
          _
        // Predicated region
        $region57: #{tpu_custom_call.1} parent=11 // pred_check
          %p508 = pneg %p314
        $region58: #{tpu_custom_call.1} parent=11 // pred_check_branch
          %510 = sbr.rel (%p508) target = $region60
        $region59: #{tpu_custom_call.1} parent=11 // pred_region
          %s512 = ssub.s32 128, 128
          %513 = vsyncadd [#allocation21], %s512
          %s515 = sshll.u32 [#allocation22], 4
          %s516 = int_to_ptr.vmem [resolvable:$true] %s515
          %518 = dma.hbm_to_vmem [thread:$0]  %s12, 128, %s516, [#allocation21]
        $region60: #{tpu_custom_call.1} parent=11 // pred_fallthru
          _
      $region12: #{tpu_custom_call.1} parent=5 // pred_fallthru
        _
      %p519 = scmp.lt.s32.totalorder %s36, 2
      // Predicated region
      $region61: #{tpu_custom_call.1} parent=5 // pred_check
        %p520 = pneg %p519
      $region62: #{tpu_custom_call.1} parent=5 // pred_check_branch
        %522 = sbr.rel (%p520) target = $region64
      $region63: #{tpu_custom_call.1} parent=5 // pred_region
        // Predicated region
        $region65: #{tpu_custom_call.1} parent=63 // pred_check
          %p523 = pneg %p56
        $region66: #{tpu_custom_call.1} parent=63 // pred_check_branch
          %525 = sbr.rel (%p523) target = $region68
        $region67: #{tpu_custom_call.1} parent=63 // pred_region
          %s526 = sand.u32 %s46, 1
          %s527 = scalar_lea.sflag [#allocation3], %s526
          %s528 = sand.u32 %s46, 1
          %s529 = smul.addr %s528, 16
          %s530 = scalar_lea.vmem [#allocation2], %s529
          %s532 = ssub.s32 256, 256
          %533 = vsyncadd %s527, %s532
          %s534 = smul.addr %s36, 2
          %s535 = smul.addr %s534, 128
          %s536 = scalar_lea.hbm %s0, %s535
          %s537 = sshll.u32 %s530, 4
          %s538 = int_to_ptr.vmem [resolvable:$true] %s537
          %543 = dma.hbm_to_vmem [thread:$0]  %s536, 256, %s538, %s527, 128, 128, 8
        $region68: #{tpu_custom_call.1} parent=63 // pred_fallthru
          _
      $region64: #{tpu_custom_call.1} parent=5 // pred_fallthru
        _
      %p544 = scmp.le.s32.totalorder 1, %s36
      %p545 = scmp.lt.s32.totalorder %s36, 3
      %p546 = pnand %p544, %p545
      %p547 = pneg %p546
      // Predicated region
      $region69: #{tpu_custom_call.1} parent=5 // pred_check
        _
      $region70: #{tpu_custom_call.1} parent=5 // pred_check_branch
        %549 = sbr.rel (%p546) target = $region72
      $region71: #{tpu_custom_call.1} parent=5 // pred_region
        %s550 = ssub.s32 %s36, 1
        %s551 = sand.u32 %s49, 1
        %s552 = scalar_lea.sflag [#allocation3], %s551
        %s553 = sand.u32 %s49, 1
        %s554 = smul.addr %s553, 16
        %s555 = scalar_lea.vmem [#allocation2], %s554
        // Predicated region
        $region73: #{tpu_custom_call.1} parent=71 // pred_check
          %p556 = pneg %p62
        $region74: #{tpu_custom_call.1} parent=71 // pred_check_branch
          %558 = sbr.rel (%p556) target = $region76
        $region75: #{tpu_custom_call.1} parent=71 // pred_region
          %559 = dma.done %s552, 256
        $region76: #{tpu_custom_call.1} parent=71 // pred_fallthru
          _
        // Predicated region
        $region77: #{tpu_custom_call.1} parent=71 // pred_check
          %p560 = pneg %p83
        $region78: #{tpu_custom_call.1} parent=71 // pred_check_branch
          %562 = sbr.rel (%p560) target = $region80
        $region79: #{tpu_custom_call.1} parent=71 // pred_region
          %563 = dma.done [#allocation6], 64
        $region80: #{tpu_custom_call.1} parent=71 // pred_fallthru
          _
        // Predicated region
        $region81: #{tpu_custom_call.1} parent=71 // pred_check
          %p564 = pneg %p104
        $region82: #{tpu_custom_call.1} parent=71 // pred_check_branch
          %566 = sbr.rel (%p564) target = $region84
        $region83: #{tpu_custom_call.1} parent=71 // pred_region
          %567 = dma.done [#allocation6], 16
        $region84: #{tpu_custom_call.1} parent=71 // pred_fallthru
          _
        // Predicated region
        $region85: #{tpu_custom_call.1} parent=71 // pred_check
          %p568 = pneg %p125
        $region86: #{tpu_custom_call.1} parent=71 // pred_check_branch
          %570 = sbr.rel (%p568) target = $region88
        $region87: #{tpu_custom_call.1} parent=71 // pred_region
          %571 = dma.done [#allocation9], 16
        $region88: #{tpu_custom_call.1} parent=71 // pred_fallthru
          _
        // Predicated region
        $region89: #{tpu_custom_call.1} parent=71 // pred_check
          %p572 = pneg %p146
        $region90: #{tpu_custom_call.1} parent=71 // pred_check_branch
          %574 = sbr.rel (%p572) target = $region92
        $region91: #{tpu_custom_call.1} parent=71 // pred_region
          %575 = dma.done [#allocation9], 16
        $region92: #{tpu_custom_call.1} parent=71 // pred_fallthru
          _
        // Predicated region
        $region93: #{tpu_custom_call.1} parent=71 // pred_check
          %p576 = pneg %p167
        $region94: #{tpu_custom_call.1} parent=71 // pred_check_branch
          %578 = sbr.rel (%p576) target = $region96
        $region95: #{tpu_custom_call.1} parent=71 // pred_region
          %579 = dma.done [#allocation12], 2048
        $region96: #{tpu_custom_call.1} parent=71 // pred_fallthru
          _
        // Predicated region
        $region97: #{tpu_custom_call.1} parent=71 // pred_check
          %p580 = pneg %p188
        $region98: #{tpu_custom_call.1} parent=71 // pred_check_branch
          %582 = sbr.rel (%p580) target = $region100
        $region99: #{tpu_custom_call.1} parent=71 // pred_region
          %583 = dma.done [#allocation12], 128
        $region100: #{tpu_custom_call.1} parent=71 // pred_fallthru
          _
        // Predicated region
        $region101: #{tpu_custom_call.1} parent=71 // pred_check
          %p584 = pneg %p209
        $region102: #{tpu_custom_call.1} parent=71 // pred_check_branch
          %586 = sbr.rel (%p584) target = $region104
        $region103: #{tpu_custom_call.1} parent=71 // pred_region
          %587 = dma.done [#allocation15], 1024
        $region104: #{tpu_custom_call.1} parent=71 // pred_fallthru
          _
        // Predicated region
        $region105: #{tpu_custom_call.1} parent=71 // pred_check
          %p588 = pneg %p230
        $region106: #{tpu_custom_call.1} parent=71 // pred_check_branch
          %590 = sbr.rel (%p588) target = $region108
        $region107: #{tpu_custom_call.1} parent=71 // pred_region
          %591 = dma.done [#allocation15], 16
        $region108: #{tpu_custom_call.1} parent=71 // pred_fallthru
          _
        // Predicated region
        $region109: #{tpu_custom_call.1} parent=71 // pred_check
          %p592 = pneg %p251
        $region110: #{tpu_custom_call.1} parent=71 // pred_check_branch
          %594 = sbr.rel (%p592) target = $region112
        $region111: #{tpu_custom_call.1} parent=71 // pred_region
          %595 = dma.done [#allocation18], 16
        $region112: #{tpu_custom_call.1} parent=71 // pred_fallthru
          _
        // Predicated region
        $region113: #{tpu_custom_call.1} parent=71 // pred_check
          %p596 = pneg %p272
        $region114: #{tpu_custom_call.1} parent=71 // pred_check_branch
          %598 = sbr.rel (%p596) target = $region116
        $region115: #{tpu_custom_call.1} parent=71 // pred_region
          %599 = dma.done [#allocation18], 16
        $region116: #{tpu_custom_call.1} parent=71 // pred_fallthru
          _
        // Predicated region
        $region117: #{tpu_custom_call.1} parent=71 // pred_check
          %p600 = pneg %p293
        $region118: #{tpu_custom_call.1} parent=71 // pred_check_branch
          %602 = sbr.rel (%p600) target = $region120
        $region119: #{tpu_custom_call.1} parent=71 // pred_region
          %603 = dma.done [#allocation21], 2048
        $region120: #{tpu_custom_call.1} parent=71 // pred_fallthru
          _
        // Predicated region
        $region121: #{tpu_custom_call.1} parent=71 // pred_check
          %p604 = pneg %p314
        $region122: #{tpu_custom_call.1} parent=71 // pred_check_branch
          %606 = sbr.rel (%p604) target = $region124
        $region123: #{tpu_custom_call.1} parent=71 // pred_region
          %607 = dma.done [#allocation21], 128
        $region124: #{tpu_custom_call.1} parent=71 // pred_fallthru
          _
        %s608 = sand.u32 %s49, 1
        %s609 = scalar_lea.sflag [#allocation3], %s608
        %s610 = sand.u32 %s49, 1
        %s611 = smul.addr %s610, 16
        %s612 = scalar_lea.vmem [#allocation2], %s611
        %p613 = pneg %p62
        %p614 = pneg %p59
        %p615 = pneg %p83
        %p616 = pneg %p80
        %p617 = pneg %p104
        %p618 = pneg %p101
        %p619 = pneg %p125
        %p620 = pneg %p122
        %p621 = pneg %p146
        %p622 = pneg %p143
        %p623 = pneg %p167
        %p624 = pneg %p164
        %p625 = pneg %p188
        %p626 = pneg %p185
        %p627 = pneg %p209
        %p628 = pneg %p206
        %p629 = pneg %p230
        %p630 = pneg %p227
        %p631 = pneg %p251
        %p632 = pneg %p248
        %p633 = pneg %p272
        %p634 = pneg %p269
        %p635 = pneg %p293
        %p636 = pneg %p290
        %p637 = pneg %p314
        %p638 = pneg %p311
        %p639 = pneg %p340
        %p640 = pneg %p337
        %s641 = sand.u32 %s327, 1
        %s642 = scalar_lea.sflag [#allocation4], %s641
        %s643 = sand.u32 %s327, 1
        %s644 = smul.addr %s643, 16
        %s645 = scalar_lea.vmem [#allocation23], %s644
        %p646 = pneg %p366
        %p647 = pneg %p363
        %s648 = sand.u32 %s353, 1
        %s649 = scalar_lea.sflag [#allocation25], %s648
        %s650 = sand.u32 %s353, 1
        %s651 = scalar_lea.vmem [#allocation24], %s650
        %v653 = vld [vmem:[%s555] sm:$0xff]
        %v654 = vld [vmem:[%s555 + $0x8] sm:$0xff]
        %v655 = vld [vmem:[#allocation7] sm:$0x1]
        %v656 = vld [vmem:[#allocation5] sm:$0xf]
        %658 = vset.pattern.permute.xlu0 0
        %659 = vperm.xlu0 %658, %v653
        %v660 = vpop.permute.xlu0 %659
        %663 = vset.pattern.permute.xlu0 0
        %664 = vperm.xlu0 %663, %v654
        %v665 = vpop.permute.xlu0 %664
        %v667 = vlaneseq
        %v668 = vshrl.u32 %v667, 7
        %v669 = vsub.s32 0, %v668
        %v670 = vrot.slane %v656, %v669
        %v671 = vmul.f32 %v660, %v670
        %v672 = vmul.f32 %v665, %v670
        %673 = vset.pattern.permute.xlu0 1
        %674 = vperm.xlu0 %673, %v653
        %v675 = vpop.permute.xlu0 %674
        %677 = vset.pattern.permute.xlu0 1
        %678 = vperm.xlu0 %677, %v654
        %v679 = vpop.permute.xlu0 %678
        %v681 = vlaneseq
        %v682 = vshrl.u32 %v681, 7
        %v683 = vsub.s32 1, %v682
        %v684 = vrot.slane %v656, %v683
        %v685 = vmul.f32 %v675, %v684
        %v686 = vmul.f32 %v679, %v684
        %v687 = vadd.f32 %v671, %v685
        %v688 = vadd.f32 %v672, %v686
        %689 = vset.pattern.permute.xlu0 2
        %690 = vperm.xlu0 %689, %v653
        %v691 = vpop.permute.xlu0 %690
        %693 = vset.pattern.permute.xlu0 2
        %694 = vperm.xlu0 %693, %v654
        %v695 = vpop.permute.xlu0 %694
        %v697 = vlaneseq
        %v698 = vshrl.u32 %v697, 7
        %v699 = vsub.s32 2, %v698
        %v700 = vrot.slane %v656, %v699
        %v701 = vmul.f32 %v691, %v700
        %v702 = vmul.f32 %v695, %v700
        %v703 = vadd.f32 %v687, %v701
        %v704 = vadd.f32 %v688, %v702
        %705 = vset.pattern.permute.xlu0 3
        %706 = vperm.xlu0 %705, %v653
        %v707 = vpop.permute.xlu0 %706
        %709 = vset.pattern.permute.xlu0 3
        %710 = vperm.xlu0 %709, %v654
        %v711 = vpop.permute.xlu0 %710
        %v713 = vlaneseq
        %v714 = vshrl.u32 %v713, 7
        %v715 = vsub.s32 3, %v714
        %v716 = vrot.slane %v656, %v715
        %v717 = vmul.f32 %v707, %v716
        %v718 = vmul.f32 %v711, %v716
        %v719 = vadd.f32 %v703, %v717
        %v720 = vadd.f32 %v704, %v718
        %v721 = vld [vmem:[#allocation11] sm:$0xff]
        %v722 = vld [vmem:[#allocation11 + $0x8] sm:$0xff]
        %v723 = vld [vmem:[#allocation11 + $0x10] sm:$0xff]
        %v724 = vld [vmem:[#allocation11 + $0x18] sm:$0xff]
        %v725 = vld [vmem:[#allocation11 + $0x20] sm:$0xff]
        %v726 = vld [vmem:[#allocation11 + $0x28] sm:$0xff]
        %v727 = vld [vmem:[#allocation11 + $0x30] sm:$0xff]
        %v728 = vld [vmem:[#allocation11 + $0x38] sm:$0xff]
        %v729 = vld [vmem:[#allocation11 + $0x40] sm:$0xff]
        %v730 = vld [vmem:[#allocation11 + $0x48] sm:$0xff]
        %v731 = vld [vmem:[#allocation11 + $0x50] sm:$0xff]
        %v732 = vld [vmem:[#allocation11 + $0x58] sm:$0xff]
        %v733 = vld [vmem:[#allocation11 + $0x60] sm:$0xff]
        %v734 = vld [vmem:[#allocation11 + $0x68] sm:$0xff]
        %v735 = vld [vmem:[#allocation11 + $0x70] sm:$0xff]
        %v736 = vld [vmem:[#allocation11 + $0x78] sm:$0xff]
        %v737 = vld [vmem:[#allocation13] sm:$0xff]
        %v738 = vadd.f32 %v719, %v720
        %v739 = vrot.slane %v738, 4
        %v740 = vadd.f32 %v738, %v739
        %v741 = vrot.slane %v740, 2
        %v742 = vadd.f32 %v740, %v741
        %v743 = vrot.slane %v742, 1
        %v744 = vadd.f32 %v742, %v743
        %v745 = vmul.f32 %v719, %v719
        %v746 = vmul.f32 %v720, %v720
        %v747 = vadd.f32 %v745, %v746
        %v748 = vrot.slane %v747, 4
        %v749 = vadd.f32 %v747, %v748
        %v750 = vrot.slane %v749, 2
        %v751 = vadd.f32 %v749, %v750
        %v752 = vrot.slane %v751, 1
        %v753 = vadd.f32 %v751, %v752
        %v754 = vmul.f32 %v655, 16.0
        %v755 = vadd.f32 %v744, %v754
        %v756 = vmul.f32 %v655, 2.0
        %v757 = vmul.f32 %v756, %v744
        %v758 = vadd.f32 %v753, %v757
        %v759 = vmul.f32 %v754, %v655
        %v760 = vadd.f32 %v758, %v759
        %761 = vmatprep.subr.mxu0 0.0
        %762 = vmatpush1.msra.mxu0 %v721
        %763 = vmatprep.subr.mxu0 0.0
        %764 = vmatpush1.msra.mxu0 %v722
        %765 = vmatprep.subr.mxu0 0.0
        %766 = vmatpush1.msra.mxu0 %v723
        %767 = vmatprep.subr.mxu0 0.0
        %768 = vmatpush1.msra.mxu0 %v724
        %769 = vmatprep.subr.mxu0 0.0
        %770 = vmatpush1.msra.mxu0 %v725
        %771 = vmatprep.subr.mxu0 0.0
        %772 = vmatpush1.msra.mxu0 %v726
        %773 = vmatprep.subr.mxu0 0.0
        %774 = vmatpush1.msra.mxu0 %v727
        %775 = vmatprep.subr.mxu0 0.0
        %776 = vmatpush1.msra.mxu0 %v728
        %777 = vmatprep.subr.mxu0 0.0
        %778 = vmatpush1.msra.mxu0 %v729
        %779 = vmatprep.subr.mxu0 0.0
        %780 = vmatpush1.msra.mxu0 %v730
        %781 = vmatprep.subr.mxu0 0.0
        %782 = vmatpush1.msra.mxu0 %v731
        %783 = vmatprep.subr.mxu0 0.0
        %784 = vmatpush1.msra.mxu0 %v732
        %785 = vmatprep.subr.mxu0 0.0
        %786 = vmatpush1.msra.mxu0 %v733
        %787 = vmatprep.subr.mxu0 0.0
        %788 = vmatpush1.msra.mxu0 %v734
        %789 = vmatprep.subr.mxu0 0.0
        %790 = vmatpush1.msra.mxu0 %v735
        %791 = vmatprep.subr.mxu0 0.0
        %792 = vmatpush1.msra.mxu0 %v736
        %793 = vmatprep.subr.mxu0 0.0
        %794 = vmatpush1.msra.mxu0 0.0
        %795 = vmatprep.subr.mxu0 0.0
        %796 = vmatpush1.msra.mxu0 0.0
        %797 = vmatprep.subr.mxu0 0.0
        %798 = vmatpush1.msra.mxu0 0.0
        %799 = vmatprep.subr.mxu0 0.0
        %800 = vmatpush1.msra.mxu0 0.0
        %801 = vmatprep.subr.mxu0 0.0
        %802 = vmatpush1.msra.mxu0 0.0
        %803 = vmatprep.subr.mxu0 0.0
        %804 = vmatpush1.msra.mxu0 0.0
        %805 = vmatprep.subr.mxu0 0.0
        %806 = vmatpush1.msra.mxu0 0.0
        %807 = vmatprep.subr.mxu0 0.0
        %808 = vmatpush1.msra.mxu0 0.0
        %809 = vmatprep.subr.mxu0 0.0
        %810 = vmatpush1.msra.mxu0 0.0
        %811 = vmatprep.subr.mxu0 0.0
        %812 = vmatpush1.msra.mxu0 0.0
        %813 = vmatprep.subr.mxu0 0.0
        %814 = vmatpush1.msra.mxu0 0.0
        %815 = vmatprep.subr.mxu0 0.0
        %816 = vmatpush1.msra.mxu0 0.0
        %817 = vmatprep.subr.mxu0 0.0
        %818 = vmatpush1.msra.mxu0 0.0
        %819 = vmatprep.subr.mxu0 0.0
        %820 = vmatpush1.msra.mxu0 0.0
        %821 = vmatprep.subr.mxu0 0.0
        %822 = vmatpush1.msra.mxu0 0.0
        %823 = vmatprep.subr.mxu0 0.0
        %824 = vmatpush1.msra.mxu0 0.0
        %825 = vmatprep.mubr.f32.mxu0 0.0
        %826 = vmatmul.mubr.f32.gmra.mrb[0].mxu0 %v755
        %v827 = vpop.f32.mrb[0].mxu0
        %v828 = vadd.f32 0.0, %v827
        %v829 = vpop.f32.mrb[0].mxu0
        %830 = vdwg.mxu0
        %v831 = vrcp.pop 64.0
        %v832 = vmul.f32 %v828, %v831
        %833 = vmatprep.subr.mxu0 0.0
        %834 = vmatpush1.msra.mxu0 %v721
        %835 = vmatprep.subr.mxu0 0.0
        %836 = vmatpush1.msra.mxu0 %v722
        %837 = vmatprep.subr.mxu0 0.0
        %838 = vmatpush1.msra.mxu0 %v723
        %839 = vmatprep.subr.mxu0 0.0
        %840 = vmatpush1.msra.mxu0 %v724
        %841 = vmatprep.subr.mxu0 0.0
        %842 = vmatpush1.msra.mxu0 %v725
        %843 = vmatprep.subr.mxu0 0.0
        %844 = vmatpush1.msra.mxu0 %v726
        %845 = vmatprep.subr.mxu0 0.0
        %846 = vmatpush1.msra.mxu0 %v727
        %847 = vmatprep.subr.mxu0 0.0
        %848 = vmatpush1.msra.mxu0 %v728
        %849 = vmatprep.subr.mxu0 0.0
        %850 = vmatpush1.msra.mxu0 %v729
        %851 = vmatprep.subr.mxu0 0.0
        %852 = vmatpush1.msra.mxu0 %v730
        %853 = vmatprep.subr.mxu0 0.0
        %854 = vmatpush1.msra.mxu0 %v731
        %855 = vmatprep.subr.mxu0 0.0
        %856 = vmatpush1.msra.mxu0 %v732
        %857 = vmatprep.subr.mxu0 0.0
        %858 = vmatpush1.msra.mxu0 %v733
        %859 = vmatprep.subr.mxu0 0.0
        %860 = vmatpush1.msra.mxu0 %v734
        %861 = vmatprep.subr.mxu0 0.0
        %862 = vmatpush1.msra.mxu0 %v735
        %863 = vmatprep.subr.mxu0 0.0
        %864 = vmatpush1.msra.mxu0 %v736
        %865 = vmatprep.subr.mxu0 0.0
        %866 = vmatpush1.msra.mxu0 0.0
        %867 = vmatprep.subr.mxu0 0.0
        %868 = vmatpush1.msra.mxu0 0.0
        %869 = vmatprep.subr.mxu0 0.0
        %870 = vmatpush1.msra.mxu0 0.0
        %871 = vmatprep.subr.mxu0 0.0
        %872 = vmatpush1.msra.mxu0 0.0
        %873 = vmatprep.subr.mxu0 0.0
        %874 = vmatpush1.msra.mxu0 0.0
        %875 = vmatprep.subr.mxu0 0.0
        %876 = vmatpush1.msra.mxu0 0.0
        %877 = vmatprep.subr.mxu0 0.0
        %878 = vmatpush1.msra.mxu0 0.0
        %879 = vmatprep.subr.mxu0 0.0
        %880 = vmatpush1.msra.mxu0 0.0
        %881 = vmatprep.subr.mxu0 0.0
        %882 = vmatpush1.msra.mxu0 0.0
        %883 = vmatprep.subr.mxu0 0.0
        %884 = vmatpush1.msra.mxu0 0.0
        %885 = vmatprep.subr.mxu0 0.0
        %886 = vmatpush1.msra.mxu0 0.0
        %887 = vmatprep.subr.mxu0 0.0
        %888 = vmatpush1.msra.mxu0 0.0
        %889 = vmatprep.subr.mxu0 0.0
        %890 = vmatpush1.msra.mxu0 0.0
        %891 = vmatprep.subr.mxu0 0.0
        %892 = vmatpush1.msra.mxu0 0.0
        %893 = vmatprep.subr.mxu0 0.0
        %894 = vmatpush1.msra.mxu0 0.0
        %895 = vmatprep.subr.mxu0 0.0
        %896 = vmatpush1.msra.mxu0 0.0
        %897 = vmatprep.mubr.f32.mxu0 0.0
        %898 = vmatmul.mubr.f32.gmra.mrb[0].mxu0 %v760
        %v899 = vpop.f32.mrb[0].mxu0
        %v900 = vadd.f32 0.0, %v899
        %v901 = vpop.f32.mrb[0].mxu0
        %902 = vdwg.mxu0
        %v903 = vmul.f32 %v900, %v831
        %v904 = vmul.f32 %v832, %v832
        %v905 = vsub.f32 %v903, %v904
        %v906 = vmax.f32 %v905, 0.0
        %v907 = vadd.f32 %v906, 1e-05
        %v908 = vrsqrt.pop %v907
        %vm909 = vcmask 64512
        %v911 = vsel %vm909, %v832, 0
        %913 = vmatprep.subr.mxu0 0.0
        %914 = vmatpush1.msra.mxu0 %v737
        %915 = vmatprep.subr.mxu0 0.0
        %916 = vmatpush1.msra.mxu0 0.0
        %917 = vmatprep.subr.mxu0 0.0
        %918 = vmatpush1.msra.mxu0 0.0
        %919 = vmatprep.subr.mxu0 0.0
        %920 = vmatpush1.msra.mxu0 0.0
        %921 = vmatprep.subr.mxu0 0.0
        %922 = vmatpush1.msra.mxu0 0.0
        %923 = vmatprep.subr.mxu0 0.0
        %924 = vmatpush1.msra.mxu0 0.0
        %925 = vmatprep.subr.mxu0 0.0
        %926 = vmatpush1.msra.mxu0 0.0
        %927 = vmatprep.subr.mxu0 0.0
        %928 = vmatpush1.msra.mxu0 0.0
        %929 = vmatprep.subr.mxu0 0.0
        %930 = vmatpush1.msra.mxu0 0.0
        %931 = vmatprep.subr.mxu0 0.0
        %932 = vmatpush1.msra.mxu0 0.0
        %933 = vmatprep.subr.mxu0 0.0
        %934 = vmatpush1.msra.mxu0 0.0
        %935 = vmatprep.subr.mxu0 0.0
        %936 = vmatpush1.msra.mxu0 0.0
        %937 = vmatprep.subr.mxu0 0.0
        %938 = vmatpush1.msra.mxu0 0.0
        %939 = vmatprep.subr.mxu0 0.0
        %940 = vmatpush1.msra.mxu0 0.0
        %941 = vmatprep.subr.mxu0 0.0
        %942 = vmatpush1.msra.mxu0 0.0
        %943 = vmatprep.subr.mxu0 0.0
        %944 = vmatpush1.msra.mxu0 0.0
        %945 = vmatprep.subr.mxu0 0.0
        %946 = vmatpush1.msra.mxu0 0.0
        %947 = vmatprep.subr.mxu0 0.0
        %948 = vmatpush1.msra.mxu0 0.0
        %949 = vmatprep.subr.mxu0 0.0
        %950 = vmatpush1.msra.mxu0 0.0
        %951 = vmatprep.subr.mxu0 0.0
        %952 = vmatpush1.msra.mxu0 0.0
        %953 = vmatprep.subr.mxu0 0.0
        %954 = vmatpush1.msra.mxu0 0.0
        %955 = vmatprep.subr.mxu0 0.0
        %956 = vmatpush1.msra.mxu0 0.0
        %957 = vmatprep.subr.mxu0 0.0
        %958 = vmatpush1.msra.mxu0 0.0
        %959 = vmatprep.subr.mxu0 0.0
        %960 = vmatpush1.msra.mxu0 0.0
        %961 = vmatprep.subr.mxu0 0.0
        %962 = vmatpush1.msra.mxu0 0.0
        %963 = vmatprep.subr.mxu0 0.0
        %964 = vmatpush1.msra.mxu0 0.0
        %965 = vmatprep.subr.mxu0 0.0
        %966 = vmatpush1.msra.mxu0 0.0
        %967 = vmatprep.subr.mxu0 0.0
        %968 = vmatpush1.msra.mxu0 0.0
        %969 = vmatprep.subr.mxu0 0.0
        %970 = vmatpush1.msra.mxu0 0.0
        %971 = vmatprep.subr.mxu0 0.0
        %972 = vmatpush1.msra.mxu0 0.0
        %973 = vmatprep.subr.mxu0 0.0
        %974 = vmatpush1.msra.mxu0 0.0
        %975 = vmatprep.subr.mxu0 0.0
        %976 = vmatpush1.msra.mxu0 0.0
        %977 = vmatprep.mubr.f32.mxu0 0.0
        %978 = vmatmul.mubr.f32.gmra.mrb[0].mxu0 %v911
        %v979 = vpop.f32.mrb[0].mxu0
        %v980 = vadd.f32 0.0, %v979
        %v981 = vpop.f32.mrb[0].mxu0
        %982 = vdwg.mxu0
        %v984 = vsel %vm909, %v908, 0
        %986 = vmatprep.subr.mxu0 0.0
        %987 = vmatpush1.msra.mxu0 %v737
        %988 = vmatprep.subr.mxu0 0.0
        %989 = vmatpush1.msra.mxu0 0.0
        %990 = vmatprep.subr.mxu0 0.0
        %991 = vmatpush1.msra.mxu0 0.0
        %992 = vmatprep.subr.mxu0 0.0
        %993 = vmatpush1.msra.mxu0 0.0
        %994 = vmatprep.subr.mxu0 0.0
        %995 = vmatpush1.msra.mxu0 0.0
        %996 = vmatprep.subr.mxu0 0.0
        %997 = vmatpush1.msra.mxu0 0.0
        %998 = vmatprep.subr.mxu0 0.0
        %999 = vmatpush1.msra.mxu0 0.0
        %1000 = vmatprep.subr.mxu0 0.0
        %1001 = vmatpush1.msra.mxu0 0.0
        %1002 = vmatprep.subr.mxu0 0.0
        %1003 = vmatpush1.msra.mxu0 0.0
        %1004 = vmatprep.subr.mxu0 0.0
        %1005 = vmatpush1.msra.mxu0 0.0
        %1006 = vmatprep.subr.mxu0 0.0
        %1007 = vmatpush1.msra.mxu0 0.0
        %1008 = vmatprep.subr.mxu0 0.0
        %1009 = vmatpush1.msra.mxu0 0.0
        %1010 = vmatprep.subr.mxu0 0.0
        %1011 = vmatpush1.msra.mxu0 0.0
        %1012 = vmatprep.subr.mxu0 0.0
        %1013 = vmatpush1.msra.mxu0 0.0
        %1014 = vmatprep.subr.mxu0 0.0
        %1015 = vmatpush1.msra.mxu0 0.0
        %1016 = vmatprep.subr.mxu0 0.0
        %1017 = vmatpush1.msra.mxu0 0.0
        %1018 = vmatprep.subr.mxu0 0.0
        %1019 = vmatpush1.msra.mxu0 0.0
        %1020 = vmatprep.subr.mxu0 0.0
        %1021 = vmatpush1.msra.mxu0 0.0
        %1022 = vmatprep.subr.mxu0 0.0
        %1023 = vmatpush1.msra.mxu0 0.0
        %1024 = vmatprep.subr.mxu0 0.0
        %1025 = vmatpush1.msra.mxu0 0.0
        %1026 = vmatprep.subr.mxu0 0.0
        %1027 = vmatpush1.msra.mxu0 0.0
        %1028 = vmatprep.subr.mxu0 0.0
        %1029 = vmatpush1.msra.mxu0 0.0
        %1030 = vmatprep.subr.mxu0 0.0
        %1031 = vmatpush1.msra.mxu0 0.0
        %1032 = vmatprep.subr.mxu0 0.0
        %1033 = vmatpush1.msra.mxu0 0.0
        %1034 = vmatprep.subr.mxu0 0.0
        %1035 = vmatpush1.msra.mxu0 0.0
        %1036 = vmatprep.subr.mxu0 0.0
        %1037 = vmatpush1.msra.mxu0 0.0
        %1038 = vmatprep.subr.mxu0 0.0
        %1039 = vmatpush1.msra.mxu0 0.0
        %1040 = vmatprep.subr.mxu0 0.0
        %1041 = vmatpush1.msra.mxu0 0.0
        %1042 = vmatprep.subr.mxu0 0.0
        %1043 = vmatpush1.msra.mxu0 0.0
        %1044 = vmatprep.subr.mxu0 0.0
        %1045 = vmatpush1.msra.mxu0 0.0
        %1046 = vmatprep.subr.mxu0 0.0
        %1047 = vmatpush1.msra.mxu0 0.0
        %1048 = vmatprep.subr.mxu0 0.0
        %1049 = vmatpush1.msra.mxu0 0.0
        %1050 = vmatprep.mubr.f32.mxu0 0.0
        %1051 = vmatmul.mubr.f32.gmra.mrb[0].mxu0 %v984
        %v1052 = vpop.f32.mrb[0].mxu0
        %v1053 = vadd.f32 0.0, %v1052
        %v1054 = vpop.f32.mrb[0].mxu0
        %1055 = vdwg.mxu0
        %v1056 = vld [vmem:[#allocation8] sm:$0x1]
        %v1057 = vmul.f32 %v1056, %v1053
        %v1058 = vld [vmem:[#allocation10] sm:$0x1]
        %v1059 = vsub.f32 %v655, %v980
        %v1060 = vmul.f32 %v1059, %v1057
        %v1061 = vadd.f32 %v1058, %v1060
        %v1063 = vlaneseq
        %v1064 = vshrl.u32 %v1063, 7
        %v1065 = vsub.s32 0, %v1064
        %v1066 = vrot.slane %v1057, %v1065
        %v1068 = vmul.f32 %v719, %v1066
        %v1069 = vmul.f32 %v720, %v1066
        %v1071 = vlaneseq
        %v1072 = vshrl.u32 %v1071, 7
        %v1073 = vsub.s32 0, %v1072
        %v1074 = vrot.slane %v1061, %v1073
        %v1076 = vadd.f32 %v1068, %v1074
        %v1077 = vadd.f32 %v1069, %v1074
        %v1078 = vmax.f32 %v1076, 0.0
        %v1079 = vmax.f32 %v1077, 0.0
        %v1080 = vld [vmem:[#allocation16] sm:$0x1]
        %v1081 = vpack.c.bf16 %v1079, %v1078
        %v1082 = vld [vmem:[#allocation14] sm:$0xf]
        %v1083 = vld [vmem:[#allocation14 + $0x4] sm:$0xf]
        %v1084 = vld [vmem:[#allocation14 + $0x8] sm:$0xf]
        %v1085 = vld [vmem:[#allocation14 + $0xc] sm:$0xf]
        %v1086 = vld [vmem:[#allocation14 + $0x10] sm:$0xf]
        %v1087 = vld [vmem:[#allocation14 + $0x14] sm:$0xf]
        %v1088 = vld [vmem:[#allocation14 + $0x18] sm:$0xf]
        %v1089 = vld [vmem:[#allocation14 + $0x1c] sm:$0xf]
        %v1090 = vld [vmem:[#allocation14 + $0x20] sm:$0xf]
        %v1091 = vld [vmem:[#allocation14 + $0x24] sm:$0xf]
        %v1092 = vld [vmem:[#allocation14 + $0x28] sm:$0xf]
        %v1093 = vld [vmem:[#allocation14 + $0x2c] sm:$0xf]
        %v1094 = vld [vmem:[#allocation14 + $0x30] sm:$0xf]
        %v1095 = vld [vmem:[#allocation14 + $0x34] sm:$0xf]
        %v1096 = vld [vmem:[#allocation14 + $0x38] sm:$0xf]
        %v1097 = vld [vmem:[#allocation14 + $0x3c] sm:$0xf]
        %v1114 = vunpack.c.l.b16 %v1082
        %v1115 = vunpack.c.l.b16 %v1083
        %v1116 = vunpack.c.l.b16 %v1084
        %v1117 = vunpack.c.l.b16 %v1085
        %v1118 = vunpack.c.l.b16 %v1086
        %v1119 = vunpack.c.l.b16 %v1087
        %v1120 = vunpack.c.l.b16 %v1088
        %v1121 = vunpack.c.l.b16 %v1089
        %v1122 = vunpack.c.l.b16 %v1090
        %v1123 = vunpack.c.l.b16 %v1091
        %v1124 = vunpack.c.l.b16 %v1092
        %v1125 = vunpack.c.l.b16 %v1093
        %v1126 = vunpack.c.l.b16 %v1094
        %v1127 = vunpack.c.l.b16 %v1095
        %v1128 = vunpack.c.l.b16 %v1096
        %v1129 = vunpack.c.l.b16 %v1097
        %v1130 = vpack.c.b16 %v1115, %v1114
        %v1131 = vpack.c.b16 %v1117, %v1116
        %v1132 = vpack.c.b16 %v1119, %v1118
        %v1133 = vpack.c.b16 %v1121, %v1120
        %v1134 = vpack.c.b16 %v1123, %v1122
        %v1135 = vpack.c.b16 %v1125, %v1124
        %v1136 = vpack.c.b16 %v1127, %v1126
        %v1137 = vpack.c.b16 %v1129, %v1128
        %1146 = vmatprep.subr.bf16.mxu0 0
        %1147 = vmatpush1.bf16.msra.mxu0 %v1130
        %1148 = vmatprep.subr.bf16.mxu0 0
        %1149 = vmatpush1.bf16.msra.mxu0 %v1131
        %1150 = vmatprep.subr.bf16.mxu0 0
        %1151 = vmatpush1.bf16.msra.mxu0 %v1132
        %1152 = vmatprep.subr.bf16.mxu0 0
        %1153 = vmatpush1.bf16.msra.mxu0 %v1133
        %1154 = vmatprep.subr.bf16.mxu0 0
        %1155 = vmatpush1.bf16.msra.mxu0 %v1134
        %1156 = vmatprep.subr.bf16.mxu0 0
        %1157 = vmatpush1.bf16.msra.mxu0 %v1135
        %1158 = vmatprep.subr.bf16.mxu0 0
        %1159 = vmatpush1.bf16.msra.mxu0 %v1136
        %1160 = vmatprep.subr.bf16.mxu0 0
        %1161 = vmatpush1.bf16.msra.mxu0 %v1137
        %1162 = vmatprep.subr.bf16.mxu0 0
        %1163 = vmatpush1.bf16.msra.mxu0 0
        %1164 = vmatprep.subr.bf16.mxu0 0
        %1165 = vmatpush1.bf16.msra.mxu0 0
        %1166 = vmatprep.subr.bf16.mxu0 0
        %1167 = vmatpush1.bf16.msra.mxu0 0
        %1168 = vmatprep.subr.bf16.mxu0 0
        %1169 = vmatpush1.bf16.msra.mxu0 0
        %1170 = vmatprep.subr.bf16.mxu0 0
        %1171 = vmatpush1.bf16.msra.mxu0 0
        %1172 = vmatprep.subr.bf16.mxu0 0
        %1173 = vmatpush1.bf16.msra.mxu0 0
        %1174 = vmatprep.subr.bf16.mxu0 0
        %1175 = vmatpush1.bf16.msra.mxu0 0
        %1176 = vmatprep.subr.bf16.mxu0 0
        %1177 = vmatpush1.bf16.msra.mxu0 0
        %1178 = vmatprep.mubr.bf16.mxu0 0
        %1179 = vmatmul.mubr.bf16.gmra.mrb[0].mxu0 %v1081
        %v1180 = vpop.f32.mrb[0].mxu0
        %v1181 = vadd.f32 0.0, %v1180
        %v1182 = vpop.f32.mrb[0].mxu0
        %v1183 = vpop.f32.mrb[0].mxu0
        %v1184 = vadd.f32 0.0, %v1183
        %v1185 = vpop.f32.mrb[0].mxu0
        %1186 = vdwg.mxu0
        %v1187 = vld [vmem:[#allocation20] sm:$0xff]
        %v1188 = vld [vmem:[#allocation20 + $0x8] sm:$0xff]
        %v1189 = vld [vmem:[#allocation20 + $0x10] sm:$0xff]
        %v1190 = vld [vmem:[#allocation20 + $0x18] sm:$0xff]
        %v1191 = vld [vmem:[#allocation20 + $0x20] sm:$0xff]
        %v1192 = vld [vmem:[#allocation20 + $0x28] sm:$0xff]
        %v1193 = vld [vmem:[#allocation20 + $0x30] sm:$0xff]
        %v1194 = vld [vmem:[#allocation20 + $0x38] sm:$0xff]
        %v1195 = vld [vmem:[#allocation20 + $0x40] sm:$0xff]
        %v1196 = vld [vmem:[#allocation20 + $0x48] sm:$0xff]
        %v1197 = vld [vmem:[#allocation20 + $0x50] sm:$0xff]
        %v1198 = vld [vmem:[#allocation20 + $0x58] sm:$0xff]
        %v1199 = vld [vmem:[#allocation20 + $0x60] sm:$0xff]
        %v1200 = vld [vmem:[#allocation20 + $0x68] sm:$0xff]
        %v1201 = vld [vmem:[#allocation20 + $0x70] sm:$0xff]
        %v1202 = vld [vmem:[#allocation20 + $0x78] sm:$0xff]
        %v1203 = vld [vmem:[#allocation22] sm:$0xff]
        %v1204 = vadd.f32 %v1181, %v1184
        %v1205 = vrot.slane %v1204, 4
        %v1206 = vadd.f32 %v1204, %v1205
        %v1207 = vrot.slane %v1206, 2
        %v1208 = vadd.f32 %v1206, %v1207
        %v1209 = vrot.slane %v1208, 1
        %v1210 = vadd.f32 %v1208, %v1209
        %v1211 = vmul.f32 %v1181, %v1181
        %v1212 = vmul.f32 %v1184, %v1184
        %v1213 = vadd.f32 %v1211, %v1212
        %v1214 = vrot.slane %v1213, 4
        %v1215 = vadd.f32 %v1213, %v1214
        %v1216 = vrot.slane %v1215, 2
        %v1217 = vadd.f32 %v1215, %v1216
        %v1218 = vrot.slane %v1217, 1
        %v1219 = vadd.f32 %v1217, %v1218
        %v1220 = vmul.f32 %v1080, 16.0
        %v1221 = vadd.f32 %v1210, %v1220
        %v1222 = vmul.f32 %v1080, 2.0
        %v1223 = vmul.f32 %v1222, %v1210
        %v1224 = vadd.f32 %v1219, %v1223
        %v1225 = vmul.f32 %v1220, %v1080
        %v1226 = vadd.f32 %v1224, %v1225
        %1227 = vmatprep.subr.mxu0 0.0
        %1228 = vmatpush1.msra.mxu0 %v1187
        %1229 = vmatprep.subr.mxu0 0.0
        %1230 = vmatpush1.msra.mxu0 %v1188
        %1231 = vmatprep.subr.mxu0 0.0
        %1232 = vmatpush1.msra.mxu0 %v1189
        %1233 = vmatprep.subr.mxu0 0.0
        %1234 = vmatpush1.msra.mxu0 %v1190
        %1235 = vmatprep.subr.mxu0 0.0
        %1236 = vmatpush1.msra.mxu0 %v1191
        %1237 = vmatprep.subr.mxu0 0.0
        %1238 = vmatpush1.msra.mxu0 %v1192
        %1239 = vmatprep.subr.mxu0 0.0
        %1240 = vmatpush1.msra.mxu0 %v1193
        %1241 = vmatprep.subr.mxu0 0.0
        %1242 = vmatpush1.msra.mxu0 %v1194
        %1243 = vmatprep.subr.mxu0 0.0
        %1244 = vmatpush1.msra.mxu0 %v1195
        %1245 = vmatprep.subr.mxu0 0.0
        %1246 = vmatpush1.msra.mxu0 %v1196
        %1247 = vmatprep.subr.mxu0 0.0
        %1248 = vmatpush1.msra.mxu0 %v1197
        %1249 = vmatprep.subr.mxu0 0.0
        %1250 = vmatpush1.msra.mxu0 %v1198
        %1251 = vmatprep.subr.mxu0 0.0
        %1252 = vmatpush1.msra.mxu0 %v1199
        %1253 = vmatprep.subr.mxu0 0.0
        %1254 = vmatpush1.msra.mxu0 %v1200
        %1255 = vmatprep.subr.mxu0 0.0
        %1256 = vmatpush1.msra.mxu0 %v1201
        %1257 = vmatprep.subr.mxu0 0.0
        %1258 = vmatpush1.msra.mxu0 %v1202
        %1259 = vmatprep.subr.mxu0 0.0
        %1260 = vmatpush1.msra.mxu0 0.0
        %1261 = vmatprep.subr.mxu0 0.0
        %1262 = vmatpush1.msra.mxu0 0.0
        %1263 = vmatprep.subr.mxu0 0.0
        %1264 = vmatpush1.msra.mxu0 0.0
        %1265 = vmatprep.subr.mxu0 0.0
        %1266 = vmatpush1.msra.mxu0 0.0
        %1267 = vmatprep.subr.mxu0 0.0
        %1268 = vmatpush1.msra.mxu0 0.0
        %1269 = vmatprep.subr.mxu0 0.0
        %1270 = vmatpush1.msra.mxu0 0.0
        %1271 = vmatprep.subr.mxu0 0.0
        %1272 = vmatpush1.msra.mxu0 0.0
        %1273 = vmatprep.subr.mxu0 0.0
        %1274 = vmatpush1.msra.mxu0 0.0
        %1275 = vmatprep.subr.mxu0 0.0
        %1276 = vmatpush1.msra.mxu0 0.0
        %1277 = vmatprep.subr.mxu0 0.0
        %1278 = vmatpush1.msra.mxu0 0.0
        %1279 = vmatprep.subr.mxu0 0.0
        %1280 = vmatpush1.msra.mxu0 0.0
        %1281 = vmatprep.subr.mxu0 0.0
        %1282 = vmatpush1.msra.mxu0 0.0
        %1283 = vmatprep.subr.mxu0 0.0
        %1284 = vmatpush1.msra.mxu0 0.0
        %1285 = vmatprep.subr.mxu0 0.0
        %1286 = vmatpush1.msra.mxu0 0.0
        %1287 = vmatprep.subr.mxu0 0.0
        %1288 = vmatpush1.msra.mxu0 0.0
        %1289 = vmatprep.subr.mxu0 0.0
        %1290 = vmatpush1.msra.mxu0 0.0
        %1291 = vmatprep.mubr.f32.mxu0 0.0
        %1292 = vmatmul.mubr.f32.gmra.mrb[0].mxu0 %v1221
        %v1293 = vpop.f32.mrb[0].mxu0
        %v1294 = vadd.f32 0.0, %v1293
        %v1295 = vpop.f32.mrb[0].mxu0
        %1296 = vdwg.mxu0
        %v1297 = vrcp.pop 128.0
        %v1298 = vmul.f32 %v1294, %v1297
        %1299 = vmatprep.subr.mxu0 0.0
        %1300 = vmatpush1.msra.mxu0 %v1187
        %1301 = vmatprep.subr.mxu0 0.0
        %1302 = vmatpush1.msra.mxu0 %v1188
        %1303 = vmatprep.subr.mxu0 0.0
        %1304 = vmatpush1.msra.mxu0 %v1189
        %1305 = vmatprep.subr.mxu0 0.0
        %1306 = vmatpush1.msra.mxu0 %v1190
        %1307 = vmatprep.subr.mxu0 0.0
        %1308 = vmatpush1.msra.mxu0 %v1191
        %1309 = vmatprep.subr.mxu0 0.0
        %1310 = vmatpush1.msra.mxu0 %v1192
        %1311 = vmatprep.subr.mxu0 0.0
        %1312 = vmatpush1.msra.mxu0 %v1193
        %1313 = vmatprep.subr.mxu0 0.0
        %1314 = vmatpush1.msra.mxu0 %v1194
        %1315 = vmatprep.subr.mxu0 0.0
        %1316 = vmatpush1.msra.mxu0 %v1195
        %1317 = vmatprep.subr.mxu0 0.0
        %1318 = vmatpush1.msra.mxu0 %v1196
        %1319 = vmatprep.subr.mxu0 0.0
        %1320 = vmatpush1.msra.mxu0 %v1197
        %1321 = vmatprep.subr.mxu0 0.0
        %1322 = vmatpush1.msra.mxu0 %v1198
        %1323 = vmatprep.subr.mxu0 0.0
        %1324 = vmatpush1.msra.mxu0 %v1199
        %1325 = vmatprep.subr.mxu0 0.0
        %1326 = vmatpush1.msra.mxu0 %v1200
        %1327 = vmatprep.subr.mxu0 0.0
        %1328 = vmatpush1.msra.mxu0 %v1201
        %1329 = vmatprep.subr.mxu0 0.0
        %1330 = vmatpush1.msra.mxu0 %v1202
        %1331 = vmatprep.subr.mxu0 0.0
        %1332 = vmatpush1.msra.mxu0 0.0
        %1333 = vmatprep.subr.mxu0 0.0
        %1334 = vmatpush1.msra.mxu0 0.0
        %1335 = vmatprep.subr.mxu0 0.0
        %1336 = vmatpush1.msra.mxu0 0.0
        %1337 = vmatprep.subr.mxu0 0.0
        %1338 = vmatpush1.msra.mxu0 0.0
        %1339 = vmatprep.subr.mxu0 0.0
        %1340 = vmatpush1.msra.mxu0 0.0
        %1341 = vmatprep.subr.mxu0 0.0
        %1342 = vmatpush1.msra.mxu0 0.0
        %1343 = vmatprep.subr.mxu0 0.0
        %1344 = vmatpush1.msra.mxu0 0.0
        %1345 = vmatprep.subr.mxu0 0.0
        %1346 = vmatpush1.msra.mxu0 0.0
        %1347 = vmatprep.subr.mxu0 0.0
        %1348 = vmatpush1.msra.mxu0 0.0
        %1349 = vmatprep.subr.mxu0 0.0
        %1350 = vmatpush1.msra.mxu0 0.0
        %1351 = vmatprep.subr.mxu0 0.0
        %1352 = vmatpush1.msra.mxu0 0.0
        %1353 = vmatprep.subr.mxu0 0.0
        %1354 = vmatpush1.msra.mxu0 0.0
        %1355 = vmatprep.subr.mxu0 0.0
        %1356 = vmatpush1.msra.mxu0 0.0
        %1357 = vmatprep.subr.mxu0 0.0
        %1358 = vmatpush1.msra.mxu0 0.0
        %1359 = vmatprep.subr.mxu0 0.0
        %1360 = vmatpush1.msra.mxu0 0.0
        %1361 = vmatprep.subr.mxu0 0.0
        %1362 = vmatpush1.msra.mxu0 0.0
        %1363 = vmatprep.mubr.f32.mxu0 0.0
        %1364 = vmatmul.mubr.f32.gmra.mrb[0].mxu0 %v1226
        %v1365 = vpop.f32.mrb[0].mxu0
        %v1366 = vadd.f32 0.0, %v1365
        %v1367 = vpop.f32.mrb[0].mxu0
        %1368 = vdwg.mxu0
        %v1369 = vmul.f32 %v1366, %v1297
        %v1370 = vmul.f32 %v1298, %v1298
        %v1371 = vsub.f32 %v1369, %v1370
        %v1372 = vmax.f32 %v1371, 0.0
        %v1373 = vadd.f32 %v1372, 1e-05
        %v1374 = vrsqrt.pop %v1373
        %v1376 = vsel %vm909, %v1298, 0
        %1378 = vmatprep.subr.mxu0 0.0
        %1379 = vmatpush1.msra.mxu0 %v1203
        %1380 = vmatprep.subr.mxu0 0.0
        %1381 = vmatpush1.msra.mxu0 0.0
        %1382 = vmatprep.subr.mxu0 0.0
        %1383 = vmatpush1.msra.mxu0 0.0
        %1384 = vmatprep.subr.mxu0 0.0
        %1385 = vmatpush1.msra.mxu0 0.0
        %1386 = vmatprep.subr.mxu0 0.0
        %1387 = vmatpush1.msra.mxu0 0.0
        %1388 = vmatprep.subr.mxu0 0.0
        %1389 = vmatpush1.msra.mxu0 0.0
        %1390 = vmatprep.subr.mxu0 0.0
        %1391 = vmatpush1.msra.mxu0 0.0
        %1392 = vmatprep.subr.mxu0 0.0
        %1393 = vmatpush1.msra.mxu0 0.0
        %1394 = vmatprep.subr.mxu0 0.0
        %1395 = vmatpush1.msra.mxu0 0.0
        %1396 = vmatprep.subr.mxu0 0.0
        %1397 = vmatpush1.msra.mxu0 0.0
        %1398 = vmatprep.subr.mxu0 0.0
        %1399 = vmatpush1.msra.mxu0 0.0
        %1400 = vmatprep.subr.mxu0 0.0
        %1401 = vmatpush1.msra.mxu0 0.0
        %1402 = vmatprep.subr.mxu0 0.0
        %1403 = vmatpush1.msra.mxu0 0.0
        %1404 = vmatprep.subr.mxu0 0.0
        %1405 = vmatpush1.msra.mxu0 0.0
        %1406 = vmatprep.subr.mxu0 0.0
        %1407 = vmatpush1.msra.mxu0 0.0
        %1408 = vmatprep.subr.mxu0 0.0
        %1409 = vmatpush1.msra.mxu0 0.0
        %1410 = vmatprep.subr.mxu0 0.0
        %1411 = vmatpush1.msra.mxu0 0.0
        %1412 = vmatprep.subr.mxu0 0.0
        %1413 = vmatpush1.msra.mxu0 0.0
        %1414 = vmatprep.subr.mxu0 0.0
        %1415 = vmatpush1.msra.mxu0 0.0
        %1416 = vmatprep.subr.mxu0 0.0
        %1417 = vmatpush1.msra.mxu0 0.0
        %1418 = vmatprep.subr.mxu0 0.0
        %1419 = vmatpush1.msra.mxu0 0.0
        %1420 = vmatprep.subr.mxu0 0.0
        %1421 = vmatpush1.msra.mxu0 0.0
        %1422 = vmatprep.subr.mxu0 0.0
        %1423 = vmatpush1.msra.mxu0 0.0
        %1424 = vmatprep.subr.mxu0 0.0
        %1425 = vmatpush1.msra.mxu0 0.0
        %1426 = vmatprep.subr.mxu0 0.0
        %1427 = vmatpush1.msra.mxu0 0.0
        %1428 = vmatprep.subr.mxu0 0.0
        %1429 = vmatpush1.msra.mxu0 0.0
        %1430 = vmatprep.subr.mxu0 0.0
        %1431 = vmatpush1.msra.mxu0 0.0
        %1432 = vmatprep.subr.mxu0 0.0
        %1433 = vmatpush1.msra.mxu0 0.0
        %1434 = vmatprep.subr.mxu0 0.0
        %1435 = vmatpush1.msra.mxu0 0.0
        %1436 = vmatprep.subr.mxu0 0.0
        %1437 = vmatpush1.msra.mxu0 0.0
        %1438 = vmatprep.subr.mxu0 0.0
        %1439 = vmatpush1.msra.mxu0 0.0
        %1440 = vmatprep.subr.mxu0 0.0
        %1441 = vmatpush1.msra.mxu0 0.0
        %1442 = vmatprep.mubr.f32.mxu0 0.0
        %1443 = vmatmul.mubr.f32.gmra.mrb[0].mxu0 %v1376
        %v1444 = vpop.f32.mrb[0].mxu0
        %v1445 = vadd.f32 0.0, %v1444
        %v1446 = vpop.f32.mrb[0].mxu0
        %1447 = vdwg.mxu0
        %v1449 = vsel %vm909, %v1374, 0
        %1451 = vmatprep.subr.mxu0 0.0
        %1452 = vmatpush1.msra.mxu0 %v1203
        %1453 = vmatprep.subr.mxu0 0.0
        %1454 = vmatpush1.msra.mxu0 0.0
        %1455 = vmatprep.subr.mxu0 0.0
        %1456 = vmatpush1.msra.mxu0 0.0
        %1457 = vmatprep.subr.mxu0 0.0
        %1458 = vmatpush1.msra.mxu0 0.0
        %1459 = vmatprep.subr.mxu0 0.0
        %1460 = vmatpush1.msra.mxu0 0.0
        %1461 = vmatprep.subr.mxu0 0.0
        %1462 = vmatpush1.msra.mxu0 0.0
        %1463 = vmatprep.subr.mxu0 0.0
        %1464 = vmatpush1.msra.mxu0 0.0
        %1465 = vmatprep.subr.mxu0 0.0
        %1466 = vmatpush1.msra.mxu0 0.0
        %1467 = vmatprep.subr.mxu0 0.0
        %1468 = vmatpush1.msra.mxu0 0.0
        %1469 = vmatprep.subr.mxu0 0.0
        %1470 = vmatpush1.msra.mxu0 0.0
        %1471 = vmatprep.subr.mxu0 0.0
        %1472 = vmatpush1.msra.mxu0 0.0
        %1473 = vmatprep.subr.mxu0 0.0
        %1474 = vmatpush1.msra.mxu0 0.0
        %1475 = vmatprep.subr.mxu0 0.0
        %1476 = vmatpush1.msra.mxu0 0.0
        %1477 = vmatprep.subr.mxu0 0.0
        %1478 = vmatpush1.msra.mxu0 0.0
        %1479 = vmatprep.subr.mxu0 0.0
        %1480 = vmatpush1.msra.mxu0 0.0
        %1481 = vmatprep.subr.mxu0 0.0
        %1482 = vmatpush1.msra.mxu0 0.0
        %1483 = vmatprep.subr.mxu0 0.0
        %1484 = vmatpush1.msra.mxu0 0.0
        %1485 = vmatprep.subr.mxu0 0.0
        %1486 = vmatpush1.msra.mxu0 0.0
        %1487 = vmatprep.subr.mxu0 0.0
        %1488 = vmatpush1.msra.mxu0 0.0
        %1489 = vmatprep.subr.mxu0 0.0
        %1490 = vmatpush1.msra.mxu0 0.0
        %1491 = vmatprep.subr.mxu0 0.0
        %1492 = vmatpush1.msra.mxu0 0.0
        %1493 = vmatprep.subr.mxu0 0.0
        %1494 = vmatpush1.msra.mxu0 0.0
        %1495 = vmatprep.subr.mxu0 0.0
        %1496 = vmatpush1.msra.mxu0 0.0
        %1497 = vmatprep.subr.mxu0 0.0
        %1498 = vmatpush1.msra.mxu0 0.0
        %1499 = vmatprep.subr.mxu0 0.0
        %1500 = vmatpush1.msra.mxu0 0.0
        %1501 = vmatprep.subr.mxu0 0.0
        %1502 = vmatpush1.msra.mxu0 0.0
        %1503 = vmatprep.subr.mxu0 0.0
        %1504 = vmatpush1.msra.mxu0 0.0
        %1505 = vmatprep.subr.mxu0 0.0
        %1506 = vmatpush1.msra.mxu0 0.0
        %1507 = vmatprep.subr.mxu0 0.0
        %1508 = vmatpush1.msra.mxu0 0.0
        %1509 = vmatprep.subr.mxu0 0.0
        %1510 = vmatpush1.msra.mxu0 0.0
        %1511 = vmatprep.subr.mxu0 0.0
        %1512 = vmatpush1.msra.mxu0 0.0
        %1513 = vmatprep.subr.mxu0 0.0
        %1514 = vmatpush1.msra.mxu0 0.0
        %1515 = vmatprep.mubr.f32.mxu0 0.0
        %1516 = vmatmul.mubr.f32.gmra.mrb[0].mxu0 %v1449
        %v1517 = vpop.f32.mrb[0].mxu0
        %v1518 = vadd.f32 0.0, %v1517
        %v1519 = vpop.f32.mrb[0].mxu0
        %1520 = vdwg.mxu0
        %v1521 = vld [vmem:[#allocation17] sm:$0x1]
        %v1522 = vmul.f32 %v1521, %v1518
        %v1523 = vld [vmem:[#allocation19] sm:$0x1]
        %v1524 = vsub.f32 %v1080, %v1445
        %v1525 = vmul.f32 %v1524, %v1522
        %v1526 = vadd.f32 %v1523, %v1525
        %v1528 = vlaneseq
        %v1529 = vshrl.u32 %v1528, 7
        %v1530 = vsub.s32 0, %v1529
        %v1531 = vrot.slane %v1522, %v1530
        %v1533 = vmul.f32 %v1181, %v1531
        %v1534 = vmul.f32 %v1184, %v1531
        %v1536 = vlaneseq
        %v1537 = vshrl.u32 %v1536, 7
        %v1538 = vsub.s32 0, %v1537
        %v1539 = vrot.slane %v1526, %v1538
        %v1541 = vadd.f32 %v1533, %v1539
        %v1542 = vadd.f32 %v1534, %v1539
        %1543 = vst [vmem:[%s645] sm:$0xff] %v1541
        %1544 = vst [vmem:[%s645 + $0x8] sm:$0xff] %v1542
        %v1545 = vmax.f32 %v1541, %v1542
        %v1546 = vrot.slane %v1545, 4
        %v1547 = vmax.f32 %v1545, %v1546
        %v1548 = vrot.slane %v1547, 2
        %v1549 = vmax.f32 %v1547, %v1548
        %v1550 = vrot.slane %v1549, 1
        %v1551 = vmax.f32 %v1549, %v1550
        %1552 = vst [vmem:[%s651] sm:$0x1] %v1551
        %s1553 = sand.u32 %s327, 1
        %s1554 = scalar_lea.sflag [#allocation4], %s1553
        %s1555 = sand.u32 %s327, 1
        %s1556 = smul.addr %s1555, 16
        %s1557 = scalar_lea.vmem [#allocation23], %s1556
        %s1558 = sand.u32 %s353, 1
        %s1559 = scalar_lea.sflag [#allocation25], %s1558
        %s1560 = sand.u32 %s353, 1
        %s1561 = scalar_lea.vmem [#allocation24], %s1560
        // Predicated region
        $region125: #{tpu_custom_call.1} parent=71 // pred_check
          %p1562 = pneg %p337
        $region126: #{tpu_custom_call.1} parent=71 // pred_check_branch
          %1564 = sbr.rel (%p1562) target = $region128
        $region127: #{tpu_custom_call.1} parent=71 // pred_region
          %s1566 = ssub.s32 256, 256
          %1567 = vsyncadd %s1554, %s1566
          %s1568 = smul.addr %s41, 2
          %s1569 = smul.addr %s1568, 128
          %s1570 = scalar_lea.hbm %s13, %s1569
          %s1571 = sshll.u32 %s1557, 4
          %s1572 = int_to_ptr.vmem [resolvable:$true] %s1571
          %1577 = dma.vmem_to_hbm [thread:$0]  %s1572, 256, %s1570, %s1554, 128, 128, 8
        $region128: #{tpu_custom_call.1} parent=71 // pred_fallthru
          _
        // Predicated region
        $region129: #{tpu_custom_call.1} parent=71 // pred_check
          %p1578 = pneg %p363
        $region130: #{tpu_custom_call.1} parent=71 // pred_check_branch
          %1580 = sbr.rel (%p1578) target = $region132
        $region131: #{tpu_custom_call.1} parent=71 // pred_region
          %s1582 = ssub.s32 16, 16
          %1583 = vsyncadd %s1559, %s1582
          %s1584 = smul.addr %s41, 16
          %s1585 = scalar_lea.hbm %s14, %s1584
          %s1587 = sshll.u32 %s1561, 4
          %s1588 = int_to_ptr.vmem [resolvable:$true] %s1587
          %1590 = dma.vmem_to_hbm [thread:$0]  %s1588, 16, %s1585, %s1559
        $region132: #{tpu_custom_call.1} parent=71 // pred_fallthru
          _
      $region72: #{tpu_custom_call.1} parent=5 // pred_fallthru
        _
      %p1591 = scmp.le.s32.totalorder 2, %s36
      // Predicated region
      $region133: #{tpu_custom_call.1} parent=5 // pred_check
        %p1592 = pneg %p1591
      $region134: #{tpu_custom_call.1} parent=5 // pred_check_branch
        %1594 = sbr.rel (%p1592) target = $region136
      $region135: #{tpu_custom_call.1} parent=5 // pred_region
        %s1595 = ssub.s32 %s36, 2
        // Predicated region
        $region137: #{tpu_custom_call.1} parent=135 // pred_check
          %p1596 = pneg %p343
        $region138: #{tpu_custom_call.1} parent=135 // pred_check_branch
          %1598 = sbr.rel (%p1596) target = $region140
        $region139: #{tpu_custom_call.1} parent=135 // pred_region
          %s1599 = sand.u32 %s328, 1
          %s1600 = scalar_lea.sflag [#allocation4], %s1599
          %s1601 = sand.u32 %s328, 1
          %s1602 = smul.addr %s1601, 16
          %s1603 = scalar_lea.vmem [#allocation23], %s1602
          %1604 = dma.done %s1600, 256
        $region140: #{tpu_custom_call.1} parent=135 // pred_fallthru
          _
        // Predicated region
        $region141: #{tpu_custom_call.1} parent=135 // pred_check
          %p1605 = pneg %p369
        $region142: #{tpu_custom_call.1} parent=135 // pred_check_branch
          %1607 = sbr.rel (%p1605) target = $region144
        $region143: #{tpu_custom_call.1} parent=135 // pred_region
          %s1608 = sand.u32 %s354, 1
          %s1609 = scalar_lea.sflag [#allocation25], %s1608
          %s1610 = sand.u32 %s354, 1
          %s1611 = scalar_lea.vmem [#allocation24], %s1610
          %1612 = dma.done %s1609, 16
        $region144: #{tpu_custom_call.1} parent=135 // pred_fallthru
          _
      $region136: #{tpu_custom_call.1} parent=5 // pred_fallthru
        _
    $region6: #{tpu_custom_call.1} parent=1 // loop_footer
      %s40 = sadd.s32 1, %s36
    $region7: #{tpu_custom_call.1} parent=1 // loop_footer_branch
      %35 = sbr.rel target = $region3
    $region8: #{tpu_custom_call.1} parent=1 // loop_exit
      _
    %1613 = vsyncpa [#allocation3], 1
    %s1614 = scalar_lea.sflag [#allocation3], 1
    %1615 = vsyncpa %s1614, 1
    %1616 = vsyncpa [#allocation6], 1
    %1617 = vsyncpa [#allocation9], 1
    %1618 = vsyncpa [#allocation12], 1
    %1619 = vsyncpa [#allocation15], 1
    %1620 = vsyncpa [#allocation18], 1
    %1621 = vsyncpa [#allocation21], 1
    %1622 = vsyncpa [#allocation4], 1
    %s1623 = scalar_lea.sflag [#allocation4], 1
    %1624 = vsyncpa %s1623, 1
    %1625 = vsyncpa [#allocation25], 1
    %s1626 = scalar_lea.sflag [#allocation25], 1
    %1627 = vsyncpa %s1626, 1

</llo_original>
